<compile_context>
chip_gen: v5e
topology: v5e:2x2
jax: 0.10.0
libtpu: 0.0.40
codegen_flags: <defaults>
</compile_context>

<pallas_src>
import functools

import jax
import jax.numpy as jnp
from jax.experimental import pallas as pl
from jax.experimental.pallas import tpu as pltpu


def _round_up(n, m):
    return ((n + m - 1) // m) * m


def _pad2(a, rows, cols):
    return jnp.pad(a, ((0, rows - a.shape[0]), (0, cols - a.shape[1])))


def _pick_tiles(n_pad):
    """Pick (tm, tk): multiples of 128 dividing n_pad; prefer >=2 row tiles."""
    tk = 128
    for t in (512, 256, 128):
        if n_pad % t == 0:
            tk = t
            break
    tm = tk
    # v7x has 2 TensorCores: make sure the "parallel" row axis has >= 2 tiles.
    while n_pad // tm < 2 and tm > 128:
        tm //= 2
    return tm, tk


# Keep x resident in VMEM (constant-index full block) below this byte budget
# (counts the double buffer; conservative for v5e's 16 MiB default scoped VMEM).
_X_RESIDENT_BUDGET = 6 * 1024 * 1024


# ----------------------------- Pallas kernels ------------------------------

def _gin_layer_kernel(ids_ref, counts_ref, a_ref, x_ref, w1_ref, b1_ref,
                      w2_ref, b2_ref, o_ref, acc_ref, *, x_resident, tk,
                      final_relu):
    """One GIN layer: (A_hat @ x) -> Linear -> ReLU -> Linear [-> ReLU]."""
    i = pl.program_id(0)
    k = pl.program_id(1)

    @pl.when(k == 0)
    def _():
        acc_ref[...] = jnp.zeros_like(acc_ref)

    # Skip all-zero A_hat tiles entirely (block-diagonal batched graphs).
    @pl.when(k < counts_ref[i])
    def _():
        a_bf16 = a_ref[...].astype(jnp.bfloat16)        # int8 -> bf16 (VPU filler)
        if x_resident:
            kt = ids_ref[i, k]
            start = pl.multiple_of(kt * tk, tk)
            x_blk = x_ref[pl.ds(start, tk), :]
        else:
            x_blk = x_ref[...]
        acc_ref[...] += jnp.dot(a_bf16, x_blk,
                                preferred_element_type=jnp.float32)

    @pl.when(k == pl.num_programs(1) - 1)
    def _():
        agg = acc_ref[...].astype(jnp.bfloat16)
        h = jnp.dot(agg, w1_ref[...],
                    preferred_element_type=jnp.float32) + b1_ref[...]
        h = jnp.maximum(h, 0.0)
        y = jnp.dot(h.astype(jnp.bfloat16), w2_ref[...],
                    preferred_element_type=jnp.float32) + b2_ref[...]
        if final_relu:                                   # static, no VPU select
            y = jnp.maximum(y, 0.0)
        o_ref[...] = y.astype(o_ref.dtype)


def _gin_final_pool_kernel(ids_ref, counts_ref, a_ref, x_ref, w1_ref, b1_ref,
                           w2_ref, b2_ref, p_ref, o_ref, acc_ref, *,
                           x_resident, tk):
    """Last GIN layer with global_mean_pool fused into the epilogue."""
    i = pl.program_id(0)
    k = pl.program_id(1)

    @pl.when((i == 0) & (k == 0))
    def _():
        o_ref[...] = jnp.zeros_like(o_ref)

    @pl.when(k == 0)
    def _():
        acc_ref[...] = jnp.zeros_like(acc_ref)

    @pl.when(k < counts_ref[i])
    def _():
        a_bf16 = a_ref[...].astype(jnp.bfloat16)
        if x_resident:
            kt = ids_ref[i, k]
            start = pl.multiple_of(kt * tk, tk)
            x_blk = x_ref[pl.ds(start, tk), :]
        else:
            x_blk = x_ref[...]
        acc_ref[...] += jnp.dot(a_bf16, x_blk,
                                preferred_element_type=jnp.float32)

    @pl.when(k == pl.num_programs(1) - 1)
    def _():
        agg = acc_ref[...].astype(jnp.bfloat16)
        h = jnp.dot(agg, w1_ref[...],
                    preferred_element_type=jnp.float32) + b1_ref[...]
        h = jnp.maximum(h, 0.0)
        y = jnp.dot(h.astype(jnp.bfloat16), w2_ref[...],
                    preferred_element_type=jnp.float32) + b2_ref[...]
        # Fused global_mean_pool: accumulate P[:, row-tile] @ y (P in f32 so
        # 1/|graph| is exact; tiny matmul, hides in the epilogue).
        o_ref[...] += jnp.dot(p_ref[...], y,
                              preferred_element_type=jnp.float32)


# ------------------------------ host wrappers -------------------------------

def _make_in_specs(tm, tk, n_pad, f_in, d_hid, d_out, x_resident):
    a_spec = pl.BlockSpec((tm, tk), lambda i, k, ids, cnt: (i, ids[i, k]))
    if x_resident:
        x_spec = pl.BlockSpec((n_pad, f_in), lambda i, k, ids, cnt: (0, 0))
    else:
        x_spec = pl.BlockSpec((tk, f_in), lambda i, k, ids, cnt: (ids[i, k], 0))
    return [
        a_spec,
        x_spec,
        pl.BlockSpec((f_in, d_hid), lambda i, k, ids, cnt: (0, 0)),   # W1
        pl.BlockSpec((1, d_hid), lambda i, k, ids, cnt: (0, 0)),      # b1
        pl.BlockSpec((d_hid, d_out), lambda i, k, ids, cnt: (0, 0)),  # W2
        pl.BlockSpec((1, d_out), lambda i, k, ids, cnt: (0, 0)),      # b2
    ]


def _vmem_limit_bytes(tm, tk, n_pad, f_in, d_hid, d_out, b_pad, x_resident):
    est = 2 * tm * tk                                            # A_hat int8 (x2)
    est += 2 * n_pad * f_in * 2 if x_resident else 2 * tk * f_in * 2
    est += 2 * (f_in * d_hid + d_hid * d_out) * 2                # W1, W2 bf16 (x2)
    est += 2 * (d_hid + d_out) * 4                               # biases (x2)
    est += 2 * max(tm, b_pad) * d_out * 4                        # output (x2)
    est += 2 * b_pad * tm * 4                                    # P f32 (x2)
    est += tm * f_in * 4                                         # f32 accumulator
    if est <= 12 * 1024 * 1024:
        return None                      # default scoped VMEM is plenty
    return min(2 * est, 100 * 1024 * 1024)


def gin_layer(a_hat, x, ids, counts, w1, b1, w2, b2, *, tm, tk):
    n_pad = a_hat.shape[0]
    f_in = x.shape[1]
    d_hid = w1.shape[1]
    d_out = w2.shape[1]
    x_resident = 2 * n_pad * f_in * 2 <= _X_RESIDENT_BUDGET
    kernel = functools.partial(_gin_layer_kernel, x_resident=x_resident,
                               tk=tk, final_relu=True)
    return pl.pallas_call(
        kernel,
        out_shape=jax.ShapeDtypeStruct((n_pad, d_out), jnp.bfloat16),
        grid_spec=pltpu.PrefetchScalarGridSpec(
            num_scalar_prefetch=2,                 # ids, counts -> SMEM
            grid=(n_pad // tm, n_pad // tk),
            in_specs=_make_in_specs(tm, tk, n_pad, f_in, d_hid, d_out,
                                    x_resident),
            out_specs=pl.BlockSpec((tm, d_out), lambda i, k, ids, cnt: (i, 0)),
            scratch_shapes=[pltpu.VMEM((tm, f_in), jnp.float32)],
        ),
        compiler_params=pltpu.CompilerParams(
            dimension_semantics=("parallel", "arbitrary"),
            vmem_limit_bytes=_vmem_limit_bytes(tm, tk, n_pad, f_in, d_hid,
                                               d_out, 8, x_resident)),
    )(ids, counts, a_hat, x, w1, b1, w2, b2)


def gin_final_layer_pooled(a_hat, x, ids, counts, w1, b1, w2, b2, p, *, tm, tk):
    n_pad = a_hat.shape[0]
    f_in = x.shape[1]
    d_hid = w1.shape[1]
    d_out = w2.shape[1]
    b_pad = p.shape[0]
    x_resident = 2 * n_pad * f_in * 2 <= _X_RESIDENT_BUDGET
    in_specs = _make_in_specs(tm, tk, n_pad, f_in, d_hid, d_out, x_resident)
    in_specs.append(pl.BlockSpec((b_pad, tm), lambda i, k, ids, cnt: (0, i)))
    kernel = functools.partial(_gin_final_pool_kernel, x_resident=x_resident,
                               tk=tk)
    return pl.pallas_call(
        kernel,
        out_shape=jax.ShapeDtypeStruct((b_pad, d_out), jnp.float32),
        grid_spec=pltpu.PrefetchScalarGridSpec(
            num_scalar_prefetch=2,
            grid=(n_pad // tm, n_pad // tk),
            in_specs=in_specs,
            # Pooled output is accumulated across row tiles -> constant index.
            out_specs=pl.BlockSpec((b_pad, d_out), lambda i, k, ids, cnt: (0, 0)),
            scratch_shapes=[pltpu.VMEM((tm, f_in), jnp.float32)],
        ),
        compiler_params=pltpu.CompilerParams(
            # TODO(synk): per-core pooled partials to regain v7x megacore here.
            dimension_semantics=("arbitrary", "arbitrary"),
            vmem_limit_bytes=_vmem_limit_bytes(tm, tk, n_pad, f_in, d_hid,
                                               d_out, b_pad, x_resident)),
    )(ids, counts, a_hat, x, w1, b1, w2, b2, p)


# ------------------------------- GIN model ----------------------------------

def init_linear(key, fan_in, fan_out, fan_in_pad, fan_out_pad):
    kw, kb = jax.random.split(key)
    bound = 1.0 / (float(fan_in) ** 0.5)
    w = jax.random.uniform(kw, (fan_in, fan_out), jnp.float32, -bound, bound)
    b = jax.random.uniform(kb, (fan_out,), jnp.float32, -bound, bound)
    w_pad = jnp.zeros((fan_in_pad, fan_out_pad), jnp.float32)
    w_pad = w_pad.at[:fan_in, :fan_out].set(w)
    b_pad = jnp.zeros((1, fan_out_pad), jnp.float32).at[0, :fan_out].set(b)
    return w_pad.astype(jnp.bfloat16), b_pad


def init_gin_params(key, in_channels, hidden_channels, out_channels,
                    num_layers=3):
    in_p = _round_up(in_channels, 128)
    hid_p = _round_up(hidden_channels, 128)
    out_p = _round_up(out_channels, 128)
    dims = ([(in_channels, in_p, hidden_channels, hid_p,
              hidden_channels, hid_p)]
            + [(hidden_channels, hid_p, hidden_channels, hid_p,
                hidden_channels, hid_p)] * (num_layers - 2)
            + [(hidden_channels, hid_p, hidden_channels, hid_p,
                out_channels, out_p)])
    params = []
    for (d_in, d_in_p, d_hid, d_hid_p, d_out, d_out_p) in dims:
        key, k1, k2 = jax.random.split(key, 3)
        w1, b1 = init_linear(k1, d_in, d_hid, d_in_p, d_hid_p)
        w2, b2 = init_linear(k2, d_hid, d_out, d_hid_p, d_out_p)
        params.append((w1, b1, w2, b2))
    return params


def build_a_hat_int8(edge_index, num_nodes, n_pad, eps=0.0):
    """A_hat[i, j] = #(edges j->i) + (1+eps)*I, built at padded size in int8.

    Matches PyG 'add' aggregation (eps = 0, no pre-added self-loops; duplicate
    edges are counted). int8 is exact for edge multiplicities <= 127.
    """
    src = edge_index[0]
    dst = edge_index[1]
    a = jnp.zeros((n_pad, n_pad), jnp.int32).at[dst, src].add(1)
    diag = jnp.arange(num_nodes)
    a = a.at[diag, diag].add(jnp.int32(round(1.0 + eps)))
    return a.astype(jnp.int8)


def build_tile_schedule(a_hat, tm, tk):
    """Compacted per-row-tile list of nonzero (tm, tk) k-tiles of A_hat.

    ids[i, s]: k-tile index of the s-th nonzero tile in row-tile i; slots past
    counts[i] repeat the last valid id so the pipeline dedups their DMA.
    """
    n_pad = a_hat.shape[0]
    n_i, n_k = n_pad // tm, n_pad // tk
    blocks = a_hat.reshape(n_i, tm, n_k, tk)
    occ = jnp.any(blocks != 0, axis=(1, 3))                     # (n_i, n_k)
    counts = occ.sum(axis=1).astype(jnp.int32)
    key = jnp.where(occ, 0, 1).astype(jnp.int32)                # nonzero first
    order = jnp.argsort(key, axis=1, stable=True).astype(jnp.int32)
    pad_id = jnp.take_along_axis(order, jnp.maximum(counts - 1, 0)[:, None],
                                 axis=1)
    slot = jnp.arange(n_k, dtype=jnp.int32)[None, :]
    ids = jnp.where(slot < counts[:, None], order, pad_id)
    return ids, counts


def build_pool_matrix(batch, num_graphs, b_pad, n_pad):
    """P[b, n] = 1/|graph_b| if batch[n] == b else 0 (f32, padded with zeros)."""
    n = batch.shape[0]
    onehot = (batch[None, :] == jnp.arange(num_graphs)[:, None]).astype(
        jnp.float32)
    counts = jnp.maximum(onehot.sum(axis=1, keepdims=True), 1.0)
    return _pad2(onehot / counts, b_pad, n_pad)


def gin_forward(params, x, edge_index, batch, *, num_graphs, out_channels):
    n, f_in = x.shape
    n_pad = _round_up(n, 128)
    tm, tk = _pick_tiles(n_pad)
    f_in_pad = _round_up(f_in, 128)
    b_pad = _round_up(num_graphs, 8)

    # Built once at padded size, reused by all layers.
    a_hat = build_a_hat_int8(edge_index, n, n_pad)
    ids, counts = build_tile_schedule(a_hat, tm, tk)
    p = build_pool_matrix(batch, num_graphs, b_pad, n_pad)

    h = _pad2(x, n_pad, f_in_pad).astype(jnp.bfloat16)

    num_layers = len(params)
    for li, (w1, b1, w2, b2) in enumerate(params):
        if li < num_layers - 1:
            h = gin_layer(a_hat, h, ids, counts, w1, b1, w2, b2, tm=tm, tk=tk)
            # F.dropout(p=0.2, training=False) -> identity
        else:
            pooled = gin_final_layer_pooled(a_hat, h, ids, counts,
                                            w1, b1, w2, b2, p, tm=tm, tk=tk)
    return pooled[:num_graphs, :out_channels]


def gin_reference(params, x, edge_index, batch, *, num_graphs, out_channels):
    """Pure-JAX (non-Pallas) reference of the same forward, for a sanity check."""
    n, f_in = x.shape
    n_pad = _round_up(n, 128)
    f_in_pad = _round_up(f_in, 128)
    b_pad = _round_up(num_graphs, 8)
    a = build_a_hat_int8(edge_index, n, n_pad).astype(jnp.float32)
    h = _pad2(x, n_pad, f_in_pad).astype(jnp.bfloat16).astype(jnp.float32)
    num_layers = len(params)
    for li, (w1, b1, w2, b2) in enumerate(params):
        agg = a @ h
        h1 = jnp.maximum(agg @ w1.astype(jnp.float32) + b1, 0.0)
        h = h1 @ w2.astype(jnp.float32) + b2
        if li < num_layers - 1:
            h = jnp.maximum(h, 0.0)
            h = h.astype(jnp.bfloat16).astype(jnp.float32)
    p = build_pool_matrix(batch, num_graphs, b_pad, n_pad)
    return (p @ h)[:num_graphs, :out_channels]


# --------------------------------- main --------------------------------------

if __name__ == "__main__":
    key = jax.random.PRNGKey(0)

    num_nodes = 16
    num_edges = 40
    in_channels = 16
    hidden_channels = 32
    out_channels = 8
    num_graphs = 2

    k_x, k_e, k_p = jax.random.split(key, 3)
    x = jax.random.normal(k_x, (num_nodes, in_channels), jnp.float32)
    edge_index = jax.random.randint(k_e, (2, num_edges), 0, num_nodes,
                                    dtype=jnp.int32)
    # first half of the nodes -> graph 0, second half -> graph 1
    batch = jnp.concatenate([
        jnp.zeros(num_nodes // 2, jnp.int32),
        jnp.ones(num_nodes - num_nodes // 2, jnp.int32),
    ])

    params = init_gin_params(k_p, in_channels, hidden_channels, out_channels,
                             num_layers=3)

    fwd = jax.jit(functools.partial(gin_forward, num_graphs=num_graphs,
                                    out_channels=out_channels))
    out = fwd(params, x, edge_index, batch)
    out = jax.block_until_ready(out)
    assert out.shape == (num_graphs, out_channels)

    ref = gin_reference(params, x, edge_index, batch, num_graphs=num_graphs,
                        out_channels=out_channels)
    err = float(jnp.max(jnp.abs(out - ref)))
    assert err < 0.15, f"kernel/reference mismatch: max abs err {err}"

    print("KERNEL_OK")
</pallas_src>

<mosaic_0001>
module attributes {stable_mosaic.version = 11 : i64} {
  func.func @_gin_layer_kernel(%arg0: i32, %arg1: i32, %arg2: memref<1x1xi32, #tpu.memory_space<smem>>, %arg3: memref<1xi32, #tpu.memory_space<smem>>, %arg4: memref<128x128xi8, #tpu.memory_space<vmem>>, %arg5: memref<128x128xbf16, #tpu.memory_space<vmem>>, %arg6: memref<128x128xbf16, #tpu.memory_space<vmem>>, %arg7: memref<1x128xf32, #tpu.memory_space<vmem>>, %arg8: memref<128x128xbf16, #tpu.memory_space<vmem>>, %arg9: memref<1x128xf32, #tpu.memory_space<vmem>>, %arg10: memref<128x128xbf16, #tpu.memory_space<vmem>>, %arg11: memref<128x128xf32, #tpu.memory_space<vmem>>) attributes {dimension_semantics = [#tpu.dimension_semantics<parallel>, #tpu.dimension_semantics<arbitrary>], iteration_bounds = array<i64: 1, 1>, scalar_prefetch = 2 : i64, scratch_operands = 1 : i64, tpu.core_type = #tpu.core_type<tc>, window_params = [{transform_indices = @transform_0, window_bounds = array<i64: 128, 128>}, {pipeline_mode = #tpu.pipeline_mode<synchronous>, transform_indices = @transform_1, window_bounds = array<i64: 128, 128>}, {pipeline_mode = #tpu.pipeline_mode<synchronous>, transform_indices = @transform_2, window_bounds = array<i64: 128, 128>}, {pipeline_mode = #tpu.pipeline_mode<synchronous>, transform_indices = @transform_3, window_bounds = array<i64: 1, 128>}, {pipeline_mode = #tpu.pipeline_mode<synchronous>, transform_indices = @transform_4, window_bounds = array<i64: 128, 128>}, {pipeline_mode = #tpu.pipeline_mode<synchronous>, transform_indices = @transform_5, window_bounds = array<i64: 1, 128>}, {transform_indices = @transform_6, window_bounds = array<i64: 128, 128>}]} {
    %c0_i32 = arith.constant 0 : i32
    %0 = arith.cmpi eq, %arg1, %c0_i32 : i32
    %1 = arith.extui %0 : i1 to i32
    %c0_i32_0 = arith.constant 0 : i32
    %2 = arith.cmpi ne, %1, %c0_i32_0 : i32
    scf.if %2 {
      %cst = arith.constant 0.000000e+00 : f32
      %11 = vector.broadcast %cst : f32 to vector<128x128xf32>
      %c0 = arith.constant 0 : index
      %c0_4 = arith.constant 0 : index
      %12 = vector.load %arg11[%c0, %c0_4] : memref<128x128xf32, #tpu.memory_space<vmem>>, vector<128x128xf32>
      tpu.vector_store %arg11[%c0, %c0_4], %11 {strides = array<i32>} : memref<128x128xf32, #tpu.memory_space<vmem>>, vector<128x128xf32>,
    } else {
    }
    %3 = arith.index_cast %arg0 : i32 to index
    %4 = memref.load %arg3[%3] : memref<1xi32, #tpu.memory_space<smem>>
    %5 = arith.cmpi slt, %arg1, %4 : i32
    %6 = arith.extui %5 : i1 to i32
    %c0_i32_1 = arith.constant 0 : i32
    %7 = arith.cmpi ne, %6, %c0_i32_1 : i32
    scf.if %7 {
      %c0 = arith.constant 0 : index
      %c0_4 = arith.constant 0 : index
      %11 = vector.load %arg4[%c0, %c0_4] : memref<128x128xi8, #tpu.memory_space<vmem>>, vector<128x128xi8>
      %12 = arith.sitofp %11 : vector<128x128xi8> to vector<128x128xbf16>
      %13 = arith.index_cast %arg0 : i32 to index
      %14 = arith.index_cast %arg1 : i32 to index
      %15 = memref.load %arg2[%13, %14] : memref<1x1xi32, #tpu.memory_space<smem>>
      %c128_i32 = arith.constant 128 : i32
      %16 = arith.muli %15, %c128_i32 : i32
      %17 = tpu.assume_multiple %16, 128 : i32
      %18 = arith.index_cast %17 : i32 to index
      %c0_5 = arith.constant 0 : index
      %19 = vector.load %arg5[%18, %c0_5] : memref<128x128xbf16, #tpu.memory_space<vmem>>, vector<128x128xbf16>
      %c0_6 = arith.constant 0 : index
      %c0_7 = arith.constant 0 : index
      %20 = vector.load %arg11[%c0_6, %c0_7] : memref<128x128xf32, #tpu.memory_space<vmem>>, vector<128x128xf32>
      %cst = arith.constant dense<0.000000e+00> : vector<128x128xf32>
      %21 = tpu.matmul %12, %19, %cst {dimension_numbers = #tpu.dot_dimension_numbers<[1], [0], [0], [1], [0, 0, 1, 1], [], []>} : vector<128x128xbf16>, vector<128x128xbf16>, vector<128x128xf32> -> vector<128x128xf32>
      %22 = arith.addf %20, %21 : vector<128x128xf32>
      %c0_8 = arith.constant 0 : index
      %c0_9 = arith.constant 0 : index
      %23 = vector.load %arg11[%c0_8, %c0_9] : memref<128x128xf32, #tpu.memory_space<vmem>>, vector<128x128xf32>
      tpu.vector_store %arg11[%c0_8, %c0_9], %22 {strides = array<i32>} : memref<128x128xf32, #tpu.memory_space<vmem>>, vector<128x128xf32>,
    } else {
    }
    %c0_i32_2 = arith.constant 0 : i32
    %8 = arith.cmpi eq, %arg1, %c0_i32_2 : i32
    %9 = arith.extui %8 : i1 to i32
    %c0_i32_3 = arith.constant 0 : i32
    %10 = arith.cmpi ne, %9, %c0_i32_3 : i32
    scf.if %10 {
      %c0 = arith.constant 0 : index
      %c0_4 = arith.constant 0 : index
      %11 = vector.load %arg11[%c0, %c0_4] : memref<128x128xf32, #tpu.memory_space<vmem>>, vector<128x128xf32>
      %12 = arith.truncf %11 : vector<128x128xf32> to vector<128x128xbf16>
      %c0_5 = arith.constant 0 : index
      %c0_6 = arith.constant 0 : index
      %13 = vector.load %arg6[%c0_5, %c0_6] : memref<128x128xbf16, #tpu.memory_space<vmem>>, vector<128x128xbf16>
      %cst = arith.constant dense<0.000000e+00> : vector<128x128xf32>
      %14 = tpu.matmul %12, %13, %cst {dimension_numbers = #tpu.dot_dimension_numbers<[1], [0], [0], [1], [0, 0, 1, 1], [], []>} : vector<128x128xbf16>, vector<128x128xbf16>, vector<128x128xf32> -> vector<128x128xf32>
      %c0_7 = arith.constant 0 : index
      %c0_8 = arith.constant 0 : index
      %15 = vector.load %arg7[%c0_7, %c0_8] : memref<1x128xf32, #tpu.memory_space<vmem>>, vector<1x128xf32>
      %16 = vector.broadcast %15 : vector<1x128xf32> to vector<128x128xf32>
      %17 = arith.addf %14, %16 : vector<128x128xf32>
      %cst_9 = arith.constant 0.000000e+00 : f32
      %18 = vector.broadcast %cst_9 : f32 to vector<128x128xf32>
      %19 = arith.maximumf %17, %18 : vector<128x128xf32>
      %20 = arith.truncf %19 : vector<128x128xf32> to vector<128x128xbf16>
      %c0_10 = arith.constant 0 : index
      %c0_11 = arith.constant 0 : index
      %21 = vector.load %arg8[%c0_10, %c0_11] : memref<128x128xbf16, #tpu.memory_space<vmem>>, vector<128x128xbf16>
      %cst_12 = arith.constant dense<0.000000e+00> : vector<128x128xf32>
      %22 = tpu.matmul %20, %21, %cst_12 {dimension_numbers = #tpu.dot_dimension_numbers<[1], [0], [0], [1], [0, 0, 1, 1], [], []>} : vector<128x128xbf16>, vector<128x128xbf16>, vector<128x128xf32> -> vector<128x128xf32>
      %c0_13 = arith.constant 0 : index
      %c0_14 = arith.constant 0 : index
      %23 = vector.load %arg9[%c0_13, %c0_14] : memref<1x128xf32, #tpu.memory_space<vmem>>, vector<1x128xf32>
      %24 = vector.broadcast %23 : vector<1x128xf32> to vector<128x128xf32>
      %25 = arith.addf %22, %24 : vector<128x128xf32>
      %cst_15 = arith.constant 0.000000e+00 : f32
      %26 = vector.broadcast %cst_15 : f32 to vector<128x128xf32>
      %27 = arith.maximumf %25, %26 : vector<128x128xf32>
      %28 = arith.truncf %27 : vector<128x128xf32> to vector<128x128xbf16>
      %c0_16 = arith.constant 0 : index
      %c0_17 = arith.constant 0 : index
      %29 = vector.load %arg10[%c0_16, %c0_17] : memref<128x128xbf16, #tpu.memory_space<vmem>>, vector<128x128xbf16>
      tpu.vector_store %arg10[%c0_16, %c0_17], %28 {strides = array<i32>} : memref<128x128xbf16, #tpu.memory_space<vmem>>, vector<128x128xbf16>,
    } else {
    }
    return
  }
  func.func @transform_0(%arg0: i32, %arg1: i32, %arg2: memref<1x1xi32, #tpu.memory_space<smem>>, %arg3: memref<1xi32, #tpu.memory_space<smem>>) -> (i32, i32) {
    %0 = arith.index_cast %arg0 : i32 to index
    %1 = arith.index_cast %arg1 : i32 to index
    %2 = memref.load %arg2[%0, %1] : memref<1x1xi32, #tpu.memory_space<smem>>
    %c0_i32 = arith.constant 0 : i32
    return %arg0, %2 : i32, i32
  }
  func.func @transform_1(%arg0: i32, %arg1: i32, %arg2: memref<1x1xi32, #tpu.memory_space<smem>>, %arg3: memref<1xi32, #tpu.memory_space<smem>>) -> (i32, i32) {
    %c0_i32 = arith.constant 0 : i32
    %c0_i32_0 = arith.constant 0 : i32
    %c0_i32_1 = arith.constant 0 : i32
    return %c0_i32, %c0_i32_0 : i32, i32
  }
  func.func @transform_2(%arg0: i32, %arg1: i32, %arg2: memref<1x1xi32, #tpu.memory_space<smem>>, %arg3: memref<1xi32, #tpu.memory_space<smem>>) -> (i32, i32) {
    %c0_i32 = arith.constant 0 : i32
    %c0_i32_0 = arith.constant 0 : i32
    %c0_i32_1 = arith.constant 0 : i32
    return %c0_i32, %c0_i32_0 : i32, i32
  }
  func.func @transform_3(%arg0: i32, %arg1: i32, %arg2: memref<1x1xi32, #tpu.memory_space<smem>>, %arg3: memref<1xi32, #tpu.memory_space<smem>>) -> (i32, i32) {
    %c0_i32 = arith.constant 0 : i32
    %c0_i32_0 = arith.constant 0 : i32
    %c0_i32_1 = arith.constant 0 : i32
    return %c0_i32, %c0_i32_0 : i32, i32
  }
  func.func @transform_4(%arg0: i32, %arg1: i32, %arg2: memref<1x1xi32, #tpu.memory_space<smem>>, %arg3: memref<1xi32, #tpu.memory_space<smem>>) -> (i32, i32) {
    %c0_i32 = arith.constant 0 : i32
    %c0_i32_0 = arith.constant 0 : i32
    %c0_i32_1 = arith.constant 0 : i32
    return %c0_i32, %c0_i32_0 : i32, i32
  }
  func.func @transform_5(%arg0: i32, %arg1: i32, %arg2: memref<1x1xi32, #tpu.memory_space<smem>>, %arg3: memref<1xi32, #tpu.memory_space<smem>>) -> (i32, i32) {
    %c0_i32 = arith.constant 0 : i32
    %c0_i32_0 = arith.constant 0 : i32
    %c0_i32_1 = arith.constant 0 : i32
    return %c0_i32, %c0_i32_0 : i32, i32
  }
  func.func @transform_6(%arg0: i32, %arg1: i32, %arg2: memref<1x1xi32, #tpu.memory_space<smem>>, %arg3: memref<1xi32, #tpu.memory_space<smem>>) -> (i32, i32) {
    %c0_i32 = arith.constant 0 : i32
    %c0_i32_0 = arith.constant 0 : i32
    return %arg0, %c0_i32 : i32, i32
  }
}

module attributes {stable_mosaic.version = 11 : i64} {
  func.func @_gin_final_pool_kernel(%arg0: i32, %arg1: i32, %arg2: memref<1x1xi32, #tpu.memory_space<smem>>, %arg3: memref<1xi32, #tpu.memory_space<smem>>, %arg4: memref<128x128xi8, #tpu.memory_space<vmem>>, %arg5: memref<128x128xbf16, #tpu.memory_space<vmem>>, %arg6: memref<128x128xbf16, #tpu.memory_space<vmem>>, %arg7: memref<1x128xf32, #tpu.memory_space<vmem>>, %arg8: memref<128x128xbf16, #tpu.memory_space<vmem>>, %arg9: memref<1x128xf32, #tpu.memory_space<vmem>>, %arg10: memref<8x128xf32, #tpu.memory_space<vmem>>, %arg11: memref<8x128xf32, #tpu.memory_space<vmem>>, %arg12: memref<128x128xf32, #tpu.memory_space<vmem>>) attributes {dimension_semantics = [#tpu.dimension_semantics<arbitrary>, #tpu.dimension_semantics<arbitrary>], iteration_bounds = array<i64: 1, 1>, scalar_prefetch = 2 : i64, scratch_operands = 1 : i64, tpu.core_type = #tpu.core_type<tc>, window_params = [{transform_indices = @transform_0, window_bounds = array<i64: 128, 128>}, {pipeline_mode = #tpu.pipeline_mode<synchronous>, transform_indices = @transform_1, window_bounds = array<i64: 128, 128>}, {pipeline_mode = #tpu.pipeline_mode<synchronous>, transform_indices = @transform_2, window_bounds = array<i64: 128, 128>}, {pipeline_mode = #tpu.pipeline_mode<synchronous>, transform_indices = @transform_3, window_bounds = array<i64: 1, 128>}, {pipeline_mode = #tpu.pipeline_mode<synchronous>, transform_indices = @transform_4, window_bounds = array<i64: 128, 128>}, {pipeline_mode = #tpu.pipeline_mode<synchronous>, transform_indices = @transform_5, window_bounds = array<i64: 1, 128>}, {transform_indices = @transform_6, window_bounds = array<i64: 8, 128>}, {pipeline_mode = #tpu.pipeline_mode<synchronous>, transform_indices = @transform_7, window_bounds = array<i64: 8, 128>}]} {
    %c0_i32 = arith.constant 0 : i32
    %0 = arith.cmpi eq, %arg0, %c0_i32 : i32
    %c0_i32_0 = arith.constant 0 : i32
    %1 = arith.cmpi eq, %arg1, %c0_i32_0 : i32
    %2 = arith.andi %0, %1 : i1
    %3 = arith.extui %2 : i1 to i32
    %c0_i32_1 = arith.constant 0 : i32
    %4 = arith.cmpi ne, %3, %c0_i32_1 : i32
    scf.if %4 {
      %cst = arith.constant 0.000000e+00 : f32
      %16 = vector.broadcast %cst : f32 to vector<8x128xf32>
      %c0 = arith.constant 0 : index
      %c0_7 = arith.constant 0 : index
      %17 = vector.load %arg11[%c0, %c0_7] : memref<8x128xf32, #tpu.memory_space<vmem>>, vector<8x128xf32>
      tpu.vector_store %arg11[%c0, %c0_7], %16 {strides = array<i32>} : memref<8x128xf32, #tpu.memory_space<vmem>>, vector<8x128xf32>,
    } else {
    }
    %c0_i32_2 = arith.constant 0 : i32
    %5 = arith.cmpi eq, %arg1, %c0_i32_2 : i32
    %6 = arith.extui %5 : i1 to i32
    %c0_i32_3 = arith.constant 0 : i32
    %7 = arith.cmpi ne, %6, %c0_i32_3 : i32
    scf.if %7 {
      %cst = arith.constant 0.000000e+00 : f32
      %16 = vector.broadcast %cst : f32 to vector<128x128xf32>
      %c0 = arith.constant 0 : index
      %c0_7 = arith.constant 0 : index
      %17 = vector.load %arg12[%c0, %c0_7] : memref<128x128xf32, #tpu.memory_space<vmem>>, vector<128x128xf32>
      tpu.vector_store %arg12[%c0, %c0_7], %16 {strides = array<i32>} : memref<128x128xf32, #tpu.memory_space<vmem>>, vector<128x128xf32>,
    } else {
    }
    %8 = arith.index_cast %arg0 : i32 to index
    %9 = memref.load %arg3[%8] : memref<1xi32, #tpu.memory_space<smem>>
    %10 = arith.cmpi slt, %arg1, %9 : i32
    %11 = arith.extui %10 : i1 to i32
    %c0_i32_4 = arith.constant 0 : i32
    %12 = arith.cmpi ne, %11, %c0_i32_4 : i32
    scf.if %12 {
      %c0 = arith.constant 0 : index
      %c0_7 = arith.constant 0 : index
      %16 = vector.load %arg4[%c0, %c0_7] : memref<128x128xi8, #tpu.memory_space<vmem>>, vector<128x128xi8>
      %17 = arith.sitofp %16 : vector<128x128xi8> to vector<128x128xbf16>
      %18 = arith.index_cast %arg0 : i32 to index
      %19 = arith.index_cast %arg1 : i32 to index
      %20 = memref.load %arg2[%18, %19] : memref<1x1xi32, #tpu.memory_space<smem>>
      %c128_i32 = arith.constant 128 : i32
      %21 = arith.muli %20, %c128_i32 : i32
      %22 = tpu.assume_multiple %21, 128 : i32
      %23 = arith.index_cast %22 : i32 to index
      %c0_8 = arith.constant 0 : index
      %24 = vector.load %arg5[%23, %c0_8] : memref<128x128xbf16, #tpu.memory_space<vmem>>, vector<128x128xbf16>
      %c0_9 = arith.constant 0 : index
      %c0_10 = arith.constant 0 : index
      %25 = vector.load %arg12[%c0_9, %c0_10] : memref<128x128xf32, #tpu.memory_space<vmem>>, vector<128x128xf32>
      %cst = arith.constant dense<0.000000e+00> : vector<128x128xf32>
      %26 = tpu.matmul %17, %24, %cst {dimension_numbers = #tpu.dot_dimension_numbers<[1], [0], [0], [1], [0, 0, 1, 1], [], []>} : vector<128x128xbf16>, vector<128x128xbf16>, vector<128x128xf32> -> vector<128x128xf32>
      %27 = arith.addf %25, %26 : vector<128x128xf32>
      %c0_11 = arith.constant 0 : index
      %c0_12 = arith.constant 0 : index
      %28 = vector.load %arg12[%c0_11, %c0_12] : memref<128x128xf32, #tpu.memory_space<vmem>>, vector<128x128xf32>
      tpu.vector_store %arg12[%c0_11, %c0_12], %27 {strides = array<i32>} : memref<128x128xf32, #tpu.memory_space<vmem>>, vector<128x128xf32>,
    } else {
    }
    %c0_i32_5 = arith.constant 0 : i32
    %13 = arith.cmpi eq, %arg1, %c0_i32_5 : i32
    %14 = arith.extui %13 : i1 to i32
    %c0_i32_6 = arith.constant 0 : i32
    %15 = arith.cmpi ne, %14, %c0_i32_6 : i32
    scf.if %15 {
      %c0 = arith.constant 0 : index
      %c0_7 = arith.constant 0 : index
      %16 = vector.load %arg12[%c0, %c0_7] : memref<128x128xf32, #tpu.memory_space<vmem>>, vector<128x128xf32>
      %17 = arith.truncf %16 : vector<128x128xf32> to vector<128x128xbf16>
      %c0_8 = arith.constant 0 : index
      %c0_9 = arith.constant 0 : index
      %18 = vector.load %arg6[%c0_8, %c0_9] : memref<128x128xbf16, #tpu.memory_space<vmem>>, vector<128x128xbf16>
      %cst = arith.constant dense<0.000000e+00> : vector<128x128xf32>
      %19 = tpu.matmul %17, %18, %cst {dimension_numbers = #tpu.dot_dimension_numbers<[1], [0], [0], [1], [0, 0, 1, 1], [], []>} : vector<128x128xbf16>, vector<128x128xbf16>, vector<128x128xf32> -> vector<128x128xf32>
      %c0_10 = arith.constant 0 : index
      %c0_11 = arith.constant 0 : index
      %20 = vector.load %arg7[%c0_10, %c0_11] : memref<1x128xf32, #tpu.memory_space<vmem>>, vector<1x128xf32>
      %21 = vector.broadcast %20 : vector<1x128xf32> to vector<128x128xf32>
      %22 = arith.addf %19, %21 : vector<128x128xf32>
      %cst_12 = arith.constant 0.000000e+00 : f32
      %23 = vector.broadcast %cst_12 : f32 to vector<128x128xf32>
      %24 = arith.maximumf %22, %23 : vector<128x128xf32>
      %25 = arith.truncf %24 : vector<128x128xf32> to vector<128x128xbf16>
      %c0_13 = arith.constant 0 : index
      %c0_14 = arith.constant 0 : index
      %26 = vector.load %arg8[%c0_13, %c0_14] : memref<128x128xbf16, #tpu.memory_space<vmem>>, vector<128x128xbf16>
      %cst_15 = arith.constant dense<0.000000e+00> : vector<128x128xf32>
      %27 = tpu.matmul %25, %26, %cst_15 {dimension_numbers = #tpu.dot_dimension_numbers<[1], [0], [0], [1], [0, 0, 1, 1], [], []>} : vector<128x128xbf16>, vector<128x128xbf16>, vector<128x128xf32> -> vector<128x128xf32>
      %c0_16 = arith.constant 0 : index
      %c0_17 = arith.constant 0 : index
      %28 = vector.load %arg9[%c0_16, %c0_17] : memref<1x128xf32, #tpu.memory_space<vmem>>, vector<1x128xf32>
      %29 = vector.broadcast %28 : vector<1x128xf32> to vector<128x128xf32>
      %30 = arith.addf %27, %29 : vector<128x128xf32>
      %c0_18 = arith.constant 0 : index
      %c0_19 = arith.constant 0 : index
      %31 = vector.load %arg11[%c0_18, %c0_19] : memref<8x128xf32, #tpu.memory_space<vmem>>, vector<8x128xf32>
      %c0_20 = arith.constant 0 : index
      %c0_21 = arith.constant 0 : index
      %32 = vector.load %arg10[%c0_20, %c0_21] : memref<8x128xf32, #tpu.memory_space<vmem>>, vector<8x128xf32>
      %cst_22 = arith.constant dense<0.000000e+00> : vector<8x128xf32>
      %33 = tpu.matmul %32, %30, %cst_22 {dimension_numbers = #tpu.dot_dimension_numbers<[1], [0], [0], [1], [0, 0, 1, 1], [], []>} : vector<8x128xf32>, vector<128x128xf32>, vector<8x128xf32> -> vector<8x128xf32>
      %34 = arith.addf %31, %33 : vector<8x128xf32>
      %c0_23 = arith.constant 0 : index
      %c0_24 = arith.constant 0 : index
      %35 = vector.load %arg11[%c0_23, %c0_24] : memref<8x128xf32, #tpu.memory_space<vmem>>, vector<8x128xf32>
      tpu.vector_store %arg11[%c0_23, %c0_24], %34 {strides = array<i32>} : memref<8x128xf32, #tpu.memory_space<vmem>>, vector<8x128xf32>,
    } else {
    }
    return
  }
  func.func @transform_0(%arg0: i32, %arg1: i32, %arg2: memref<1x1xi32, #tpu.memory_space<smem>>, %arg3: memref<1xi32, #tpu.memory_space<smem>>) -> (i32, i32) {
    %0 = arith.index_cast %arg0 : i32 to index
    %1 = arith.index_cast %arg1 : i32 to index
    %2 = memref.load %arg2[%0, %1] : memref<1x1xi32, #tpu.memory_space<smem>>
    %c0_i32 = arith.constant 0 : i32
    return %arg0, %2 : i32, i32
  }
  func.func @transform_1(%arg0: i32, %arg1: i32, %arg2: memref<1x1xi32, #tpu.memory_space<smem>>, %arg3: memref<1xi32, #tpu.memory_space<smem>>) -> (i32, i32) {
    %c0_i32 = arith.constant 0 : i32
    %c0_i32_0 = arith.constant 0 : i32
    %c0_i32_1 = arith.constant 0 : i32
    return %c0_i32, %c0_i32_0 : i32, i32
  }
  func.func @transform_2(%arg0: i32, %arg1: i32, %arg2: memref<1x1xi32, #tpu.memory_space<smem>>, %arg3: memref<1xi32, #tpu.memory_space<smem>>) -> (i32, i32) {
    %c0_i32 = arith.constant 0 : i32
    %c0_i32_0 = arith.constant 0 : i32
    %c0_i32_1 = arith.constant 0 : i32
    return %c0_i32, %c0_i32_0 : i32, i32
  }
  func.func @transform_3(%arg0: i32, %arg1: i32, %arg2: memref<1x1xi32, #tpu.memory_space<smem>>, %arg3: memref<1xi32, #tpu.memory_space<smem>>) -> (i32, i32) {
    %c0_i32 = arith.constant 0 : i32
    %c0_i32_0 = arith.constant 0 : i32
    %c0_i32_1 = arith.constant 0 : i32
    return %c0_i32, %c0_i32_0 : i32, i32
  }
  func.func @transform_4(%arg0: i32, %arg1: i32, %arg2: memref<1x1xi32, #tpu.memory_space<smem>>, %arg3: memref<1xi32, #tpu.memory_space<smem>>) -> (i32, i32) {
    %c0_i32 = arith.constant 0 : i32
    %c0_i32_0 = arith.constant 0 : i32
    %c0_i32_1 = arith.constant 0 : i32
    return %c0_i32, %c0_i32_0 : i32, i32
  }
  func.func @transform_5(%arg0: i32, %arg1: i32, %arg2: memref<1x1xi32, #tpu.memory_space<smem>>, %arg3: memref<1xi32, #tpu.memory_space<smem>>) -> (i32, i32) {
    %c0_i32 = arith.constant 0 : i32
    %c0_i32_0 = arith.constant 0 : i32
    %c0_i32_1 = arith.constant 0 : i32
    return %c0_i32, %c0_i32_0 : i32, i32
  }
  func.func @transform_6(%arg0: i32, %arg1: i32, %arg2: memref<1x1xi32, #tpu.memory_space<smem>>, %arg3: memref<1xi32, #tpu.memory_space<smem>>) -> (i32, i32) {
    %c0_i32 = arith.constant 0 : i32
    %c0_i32_0 = arith.constant 0 : i32
    return %c0_i32, %arg0 : i32, i32
  }
  func.func @transform_7(%arg0: i32, %arg1: i32, %arg2: memref<1x1xi32, #tpu.memory_space<smem>>, %arg3: memref<1xi32, #tpu.memory_space<smem>>) -> (i32, i32) {
    %c0_i32 = arith.constant 0 : i32
    %c0_i32_0 = arith.constant 0 : i32
    %c0_i32_1 = arith.constant 0 : i32
    return %c0_i32, %c0_i32_0 : i32, i32
  }
}

</mosaic_0001>

<llo_original>
// kernel: gin_forward.3
$region0: #{gin_forward.3}
  #allocation0 [shape = 'u32[]', space=smem, size = 0x4, offset = 0x4, fixed_abs, tag = 'smem constant byte address 0x4 - core index']
  #allocation1 [shape = 'u32[72,128]{1,0:T(1,128)}', space=vmem, size = 0x9000, scoped, tag = 'internal scratch']
  #allocation2 [shape = 'f32[128,128]{1,0:T(8,128)}', space=vmem, size = 0x10000, scoped, tag = 'scratch operand']
  #allocation3 [shape = 's32[1]{0}', space=sflag, size = 0x4, scoped, tag = 'scoped memory for gin_forward.3']
  #allocation4 [shape = 's32[1,1]{1,0:T(1,128)S(6)}', space=smem, size = 0x200, scoped, tag = 'prefetched SMEM operand 0']
  #allocation5 [shape = 's32[1]{0:T(128)S(6)}', space=smem, size = 0x200, scoped, tag = 'prefetched SMEM operand 1']
  %s0 = inlined_call_operand.<no memory space> [shape: s32[1,1], index: 0, kind: input, shape index: {}]
  %s1 = inlined_call_operand.<no memory space> [shape: s32[1], index: 1, kind: input, shape index: {}]
  %s2 = inlined_call_operand.vmem [shape: s8[128,128], index: 2, kind: input, shape index: {}]
  %s3 = inlined_call_operand.vmem [shape: bf16[128,128], index: 3, kind: input, shape index: {}]
  %s4 = inlined_call_operand.vmem [shape: bf16[128,128], index: 4, kind: input, shape index: {}]
  %s5 = inlined_call_operand.vmem [shape: f32[1,128], index: 5, kind: input, shape index: {}]
  %s6 = inlined_call_operand.vmem [shape: bf16[128,128], index: 6, kind: input, shape index: {}]
  %s7 = inlined_call_operand.vmem [shape: f32[1,128], index: 7, kind: input, shape index: {}]
  %s8 = inlined_call_operand.vmem [shape: bf16[128,128], index: 8, kind: output, shape index: {}]
  %s9 = sld [smem:[#allocation0]]
  $region46: #{gin_forward.3} parent=0
    _
  %s11 = ssub.s32 1, %s9
  %s12 = scalar_select 0, %s11, %s9
  %13 = sst [smem:[#allocation4]] %s0
  %14 = sst [smem:[#allocation5]] %s1
  // Predicated region
  $region2: #{gin_forward.3} parent=0 // pred_check
    _
  $region3: #{gin_forward.3} parent=0 // pred_check_branch
    %16 = sbr.rel (0) target = $region5
  $region4: #{gin_forward.3} parent=0 // pred_region
    %s17 = sadd.s32 0, 0
    %s18 = smul.u32 %s17, 128
    %s19 = sadd.s32 %s18, 0
    %s20 = sld [smem:[#allocation4 + %s19]]
    %p21 = scmp.lt.s32.totalorder %s20, 0
    %s22 = scalar_select %p21, %s20, 0
    %s23 = smul.addr %s22, 8
    %s24 = scalar_lea.vmem %s2, %s23
    %s25 = sadd.s32 0, 0
    %s26 = smul.u32 %s25, 128
    %s27 = sadd.s32 %s26, 0
    %s28 = sld [smem:[#allocation4 + %s27]]
  $region5: #{gin_forward.3} parent=0 // pred_fallthru
    _
  // Predicated region
  $region6: #{gin_forward.3} parent=0 // pred_check
    _
  $region7: #{gin_forward.3} parent=0 // pred_check_branch
    %30 = sbr.rel (0) target = $region9
  $region8: #{gin_forward.3} parent=0 // pred_region
    _
  $region9: #{gin_forward.3} parent=0 // pred_fallthru
    _
  // Predicated region
  $region10: #{gin_forward.3} parent=0 // pred_check
    _
  $region11: #{gin_forward.3} parent=0 // pred_check_branch
    %32 = sbr.rel (0) target = $region13
  $region12: #{gin_forward.3} parent=0 // pred_region
    _
  $region13: #{gin_forward.3} parent=0 // pred_fallthru
    _
  // Predicated region
  $region14: #{gin_forward.3} parent=0 // pred_check
    _
  $region15: #{gin_forward.3} parent=0 // pred_check_branch
    %34 = sbr.rel (0) target = $region17
  $region16: #{gin_forward.3} parent=0 // pred_region
    _
  $region17: #{gin_forward.3} parent=0 // pred_fallthru
    _
  // Predicated region
  $region18: #{gin_forward.3} parent=0 // pred_check
    _
  $region19: #{gin_forward.3} parent=0 // pred_check_branch
    %36 = sbr.rel (0) target = $region21
  $region20: #{gin_forward.3} parent=0 // pred_region
    _
  $region21: #{gin_forward.3} parent=0 // pred_fallthru
    _
  // Predicated region
  $region22: #{gin_forward.3} parent=0 // pred_check
    _
  $region23: #{gin_forward.3} parent=0 // pred_check_branch
    %38 = sbr.rel (0) target = $region25
  $region24: #{gin_forward.3} parent=0 // pred_region
    _
  $region25: #{gin_forward.3} parent=0 // pred_fallthru
    _
  %s39 = sadd.s32 0, 0
  %s40 = smul.u32 %s39, 128
  %s41 = sadd.s32 %s40, 0
  %s42 = sld [smem:[#allocation4 + %s41]]
  %p43 = scmp.lt.s32.totalorder %s42, 0
  %s44 = scalar_select %p43, %s42, 0
  %s45 = smul.addr %s44, 8
  %s46 = scalar_lea.vmem %s2, %s45
  %s47 = sadd.s32 0, 0
  %s48 = smul.u32 %s47, 128
  %s49 = sadd.s32 %s48, 0
  %s50 = sld [smem:[#allocation4 + %s49]]
  %p51 = scmp.lt.s32.totalorder %s50, 0
  %s52 = scalar_select %p51, %s50, 0
  %s53 = smul.addr %s52, 8
  %s54 = scalar_lea.vmem %s2, %s53
  %s55 = sadd.s32 0, 0
  %s56 = smul.u32 %s55, 128
  %s57 = sadd.s32 %s56, 0
  %s58 = sld [smem:[#allocation4 + %s57]]
  %p59 = scmp.eq.s32.totalorder 0, 0
  // Predicated region
  $region26: #{gin_forward.3} parent=0 // pred_check
    %p60 = pneg %p59
  $region27: #{gin_forward.3} parent=0 // pred_check_branch
    %62 = sbr.rel (%p60) target = $region29
  $region28: #{gin_forward.3} parent=0 // pred_region
    %63 = vst [vmem:[#allocation2] sm:$0xff] 0.0
    %64 = vst [vmem:[#allocation2 + $0x8] sm:$0xff] 0.0
    %65 = vst [vmem:[#allocation2 + $0x10] sm:$0xff] 0.0
    %66 = vst [vmem:[#allocation2 + $0x18] sm:$0xff] 0.0
    %67 = vst [vmem:[#allocation2 + $0x20] sm:$0xff] 0.0
    %68 = vst [vmem:[#allocation2 + $0x28] sm:$0xff] 0.0
    %69 = vst [vmem:[#allocation2 + $0x30] sm:$0xff] 0.0
    %70 = vst [vmem:[#allocation2 + $0x38] sm:$0xff] 0.0
    %71 = vst [vmem:[#allocation2 + $0x40] sm:$0xff] 0.0
    %72 = vst [vmem:[#allocation2 + $0x48] sm:$0xff] 0.0
    %73 = vst [vmem:[#allocation2 + $0x50] sm:$0xff] 0.0
    %74 = vst [vmem:[#allocation2 + $0x58] sm:$0xff] 0.0
    %75 = vst [vmem:[#allocation2 + $0x60] sm:$0xff] 0.0
    %76 = vst [vmem:[#allocation2 + $0x68] sm:$0xff] 0.0
    %77 = vst [vmem:[#allocation2 + $0x70] sm:$0xff] 0.0
    %78 = vst [vmem:[#allocation2 + $0x78] sm:$0xff] 0.0
  $region29: #{gin_forward.3} parent=0 // pred_fallthru
    _
  %s79 = sld [smem:[#allocation5]]
  %p80 = scmp.lt.s32.totalorder 0, %s79
  // Predicated region
  $region30: #{gin_forward.3} parent=0 // pred_check
    %p81 = pneg %p80
  $region31: #{gin_forward.3} parent=0 // pred_check_branch
    %83 = sbr.rel (%p81) target = $region33
  $region32: #{gin_forward.3} parent=0 // pred_region
    %v84 = vld [vmem:[%s54] sm:$0xff]
    %v85 = vld [vmem:[%s54 + $0x8] sm:$0xff]
    %v86 = vld [vmem:[%s54 + $0x10] sm:$0xff]
    %v87 = vld [vmem:[%s54 + $0x18] sm:$0xff]
    %v88 = vunpack.c.0.s8 %v84
    %v89 = vunpack.c.1.s8 %v84
    %v90 = vunpack.c.2.s8 %v84
    %v91 = vunpack.c.3.s8 %v84
    %v92 = vunpack.c.0.s8 %v85
    %v93 = vunpack.c.1.s8 %v85
    %v94 = vunpack.c.2.s8 %v85
    %v95 = vunpack.c.3.s8 %v85
    %v96 = vunpack.c.0.s8 %v86
    %v97 = vunpack.c.1.s8 %v86
    %v98 = vunpack.c.2.s8 %v86
    %v99 = vunpack.c.3.s8 %v86
    %v100 = vunpack.c.0.s8 %v87
    %v101 = vunpack.c.1.s8 %v87
    %v102 = vunpack.c.2.s8 %v87
    %v103 = vunpack.c.3.s8 %v87
    %v104 = vcvt.s32.f32 %v88
    %v105 = vcvt.s32.f32 %v89
    %v106 = vcvt.s32.f32 %v90
    %v107 = vcvt.s32.f32 %v91
    %v108 = vcvt.s32.f32 %v92
    %v109 = vcvt.s32.f32 %v93
    %v110 = vcvt.s32.f32 %v94
    %v111 = vcvt.s32.f32 %v95
    %v112 = vcvt.s32.f32 %v96
    %v113 = vcvt.s32.f32 %v97
    %v114 = vcvt.s32.f32 %v98
    %v115 = vcvt.s32.f32 %v99
    %v116 = vcvt.s32.f32 %v100
    %v117 = vcvt.s32.f32 %v101
    %v118 = vcvt.s32.f32 %v102
    %v119 = vcvt.s32.f32 %v103
    %v120 = vpack.c.bf16 %v105, %v104
    %v121 = vpack.c.bf16 %v107, %v106
    %v122 = vpack.c.bf16 %v109, %v108
    %v123 = vpack.c.bf16 %v111, %v110
    %v124 = vpack.c.bf16 %v113, %v112
    %v125 = vpack.c.bf16 %v115, %v114
    %v126 = vpack.c.bf16 %v117, %v116
    %v127 = vpack.c.bf16 %v119, %v118
    %s128 = sadd.s32 0, 0
    %s129 = smul.u32 %s128, 128
    %s130 = sadd.s32 %s129, 0
    %s131 = sld [smem:[#allocation4 + %s130]]
    %s132 = smul.u32 %s131, 128
    %s133 = sshra.s32 %s132, 3
    %s134 = sand.u32 %s132, 7
    %s135 = smul.addr %s133, 4
    %s136 = scalar_lea.vmem %s3, %s135
    %v137 = vld [vmem:[%s136] sm:$0xf]
    %v138 = vld [vmem:[%s136 + $0x4] sm:$0xf]
    %v139 = vld [vmem:[%s136 + $0x8] sm:$0xf]
    %v140 = vld [vmem:[%s136 + $0xc] sm:$0xf]
    %v141 = vld [vmem:[%s136 + $0x10] sm:$0xf]
    %v142 = vld [vmem:[%s136 + $0x14] sm:$0xf]
    %v143 = vld [vmem:[%s136 + $0x18] sm:$0xf]
    %v144 = vld [vmem:[%s136 + $0x1c] sm:$0xf]
    %v145 = vld [vmem:[%s136 + $0x20] sm:$0xf]
    %v146 = vld [vmem:[%s136 + $0x24] sm:$0xf]
    %v147 = vld [vmem:[%s136 + $0x28] sm:$0xf]
    %v148 = vld [vmem:[%s136 + $0x2c] sm:$0xf]
    %v149 = vld [vmem:[%s136 + $0x30] sm:$0xf]
    %v150 = vld [vmem:[%s136 + $0x34] sm:$0xf]
    %v151 = vld [vmem:[%s136 + $0x38] sm:$0xf]
    %v152 = vld [vmem:[%s136 + $0x3c] sm:$0xf]
    %v153 = vld [vmem:[#allocation2] sm:$0xff]
    %v154 = vld [vmem:[#allocation2 + $0x8] sm:$0xff]
    %v155 = vld [vmem:[#allocation2 + $0x10] sm:$0xff]
    %v156 = vld [vmem:[#allocation2 + $0x18] sm:$0xff]
    %v157 = vld [vmem:[#allocation2 + $0x20] sm:$0xff]
    %v158 = vld [vmem:[#allocation2 + $0x28] sm:$0xff]
    %v159 = vld [vmem:[#allocation2 + $0x30] sm:$0xff]
    %v160 = vld [vmem:[#allocation2 + $0x38] sm:$0xff]
    %v161 = vld [vmem:[#allocation2 + $0x40] sm:$0xff]
    %v162 = vld [vmem:[#allocation2 + $0x48] sm:$0xff]
    %v163 = vld [vmem:[#allocation2 + $0x50] sm:$0xff]
    %v164 = vld [vmem:[#allocation2 + $0x58] sm:$0xff]
    %v165 = vld [vmem:[#allocation2 + $0x60] sm:$0xff]
    %v166 = vld [vmem:[#allocation2 + $0x68] sm:$0xff]
    %v167 = vld [vmem:[#allocation2 + $0x70] sm:$0xff]
    %v168 = vld [vmem:[#allocation2 + $0x78] sm:$0xff]
    %v185 = vunpack.c.l.b16 %v137
    %v186 = vunpack.c.l.b16 %v138
    %v187 = vunpack.c.l.b16 %v139
    %v188 = vunpack.c.l.b16 %v140
    %v189 = vunpack.c.l.b16 %v141
    %v190 = vunpack.c.l.b16 %v142
    %v191 = vunpack.c.l.b16 %v143
    %v192 = vunpack.c.l.b16 %v144
    %v193 = vunpack.c.l.b16 %v145
    %v194 = vunpack.c.l.b16 %v146
    %v195 = vunpack.c.l.b16 %v147
    %v196 = vunpack.c.l.b16 %v148
    %v197 = vunpack.c.l.b16 %v149
    %v198 = vunpack.c.l.b16 %v150
    %v199 = vunpack.c.l.b16 %v151
    %v200 = vunpack.c.l.b16 %v152
    %v201 = vpack.c.b16 %v186, %v185
    %v202 = vpack.c.b16 %v188, %v187
    %v203 = vpack.c.b16 %v190, %v189
    %v204 = vpack.c.b16 %v192, %v191
    %v205 = vpack.c.b16 %v194, %v193
    %v206 = vpack.c.b16 %v196, %v195
    %v207 = vpack.c.b16 %v198, %v197
    %v208 = vpack.c.b16 %v200, %v199
    %217 = vmatpush.bf16.msra.mxu0 %v208
    %218 = vmatpush.bf16.msra.mxu0 %v207
    %219 = vmatpush.bf16.msra.mxu0 %v206
    %220 = vmatpush.bf16.msra.mxu0 %v205
    %221 = vmatpush.bf16.msra.mxu0 %v204
    %222 = vmatpush.bf16.msra.mxu0 %v203
    %223 = vmatpush.bf16.msra.mxu0 %v202
    %224 = vmatpush.bf16.msra.mxu0 %v201
    %225 = vmatmul.bf16.gmra.mxu0 %v120
    %v226 = vpop.f32.mrf.mxu0
    %v227 = vadd.f32 0.0, %v226
    %v228 = vpop.f32.mrf.mxu0
    %v229 = vadd.f32 0.0, %v228
    %230 = vmatmul.bf16.gmra.mxu0 %v121
    %v231 = vpop.f32.mrf.mxu0
    %v232 = vadd.f32 0.0, %v231
    %v233 = vpop.f32.mrf.mxu0
    %v234 = vadd.f32 0.0, %v233
    %235 = vmatmul.bf16.gmra.mxu0 %v122
    %v236 = vpop.f32.mrf.mxu0
    %v237 = vadd.f32 0.0, %v236
    %v238 = vpop.f32.mrf.mxu0
    %v239 = vadd.f32 0.0, %v238
    %240 = vmatmul.bf16.gmra.mxu0 %v123
    %v241 = vpop.f32.mrf.mxu0
    %v242 = vadd.f32 0.0, %v241
    %v243 = vpop.f32.mrf.mxu0
    %v244 = vadd.f32 0.0, %v243
    %245 = vmatmul.bf16.gmra.mxu0 %v124
    %v246 = vpop.f32.mrf.mxu0
    %v247 = vadd.f32 0.0, %v246
    %v248 = vpop.f32.mrf.mxu0
    %v249 = vadd.f32 0.0, %v248
    %250 = vmatmul.bf16.gmra.mxu0 %v125
    %v251 = vpop.f32.mrf.mxu0
    %v252 = vadd.f32 0.0, %v251
    %v253 = vpop.f32.mrf.mxu0
    %v254 = vadd.f32 0.0, %v253
    %255 = vmatmul.bf16.gmra.mxu0 %v126
    %v256 = vpop.f32.mrf.mxu0
    %v257 = vadd.f32 0.0, %v256
    %v258 = vpop.f32.mrf.mxu0
    %v259 = vadd.f32 0.0, %v258
    %260 = vmatmul.bf16.gmra.mxu0 %v127
    %v261 = vpop.f32.mrf.mxu0
    %v262 = vadd.f32 0.0, %v261
    %v263 = vpop.f32.mrf.mxu0
    %v264 = vadd.f32 0.0, %v263
    %265 = vdwg.mxu0
    %v266 = vadd.f32 %v153, %v227
    %v267 = vadd.f32 %v154, %v229
    %v268 = vadd.f32 %v155, %v232
    %v269 = vadd.f32 %v156, %v234
    %v270 = vadd.f32 %v157, %v237
    %v271 = vadd.f32 %v158, %v239
    %v272 = vadd.f32 %v159, %v242
    %v273 = vadd.f32 %v160, %v244
    %v274 = vadd.f32 %v161, %v247
    %v275 = vadd.f32 %v162, %v249
    %v276 = vadd.f32 %v163, %v252
    %v277 = vadd.f32 %v164, %v254
    %v278 = vadd.f32 %v165, %v257
    %v279 = vadd.f32 %v166, %v259
    %v280 = vadd.f32 %v167, %v262
    %v281 = vadd.f32 %v168, %v264
    %282 = vst [vmem:[#allocation2] sm:$0xff] %v266
    %283 = vst [vmem:[#allocation2 + $0x8] sm:$0xff] %v267
    %284 = vst [vmem:[#allocation2 + $0x10] sm:$0xff] %v268
    %285 = vst [vmem:[#allocation2 + $0x18] sm:$0xff] %v269
    %286 = vst [vmem:[#allocation2 + $0x20] sm:$0xff] %v270
    %287 = vst [vmem:[#allocation2 + $0x28] sm:$0xff] %v271
    %288 = vst [vmem:[#allocation2 + $0x30] sm:$0xff] %v272
    %289 = vst [vmem:[#allocation2 + $0x38] sm:$0xff] %v273
    %290 = vst [vmem:[#allocation2 + $0x40] sm:$0xff] %v274
    %291 = vst [vmem:[#allocation2 + $0x48] sm:$0xff] %v275
    %292 = vst [vmem:[#allocation2 + $0x50] sm:$0xff] %v276
    %293 = vst [vmem:[#allocation2 + $0x58] sm:$0xff] %v277
    %294 = vst [vmem:[#allocation2 + $0x60] sm:$0xff] %v278
    %295 = vst [vmem:[#allocation2 + $0x68] sm:$0xff] %v279
    %296 = vst [vmem:[#allocation2 + $0x70] sm:$0xff] %v280
    %297 = vst [vmem:[#allocation2 + $0x78] sm:$0xff] %v281
  $region33: #{gin_forward.3} parent=0 // pred_fallthru
    _
  // Predicated region
  $region34: #{gin_forward.3} parent=0 // pred_check
    %p298 = pneg %p59
  $region35: #{gin_forward.3} parent=0 // pred_check_branch
    %300 = sbr.rel (%p298) target = $region37
  $region36: #{gin_forward.3} parent=0 // pred_region
    %v301 = vld [vmem:[#allocation2] sm:$0xff]
    %v302 = vld [vmem:[#allocation2 + $0x8] sm:$0xff]
    %v303 = vld [vmem:[#allocation2 + $0x10] sm:$0xff]
    %v304 = vld [vmem:[#allocation2 + $0x18] sm:$0xff]
    %v305 = vld [vmem:[#allocation2 + $0x20] sm:$0xff]
    %v306 = vld [vmem:[#allocation2 + $0x28] sm:$0xff]
    %v307 = vld [vmem:[#allocation2 + $0x30] sm:$0xff]
    %v308 = vld [vmem:[#allocation2 + $0x38] sm:$0xff]
    %v309 = vld [vmem:[#allocation2 + $0x40] sm:$0xff]
    %v310 = vld [vmem:[#allocation2 + $0x48] sm:$0xff]
    %v311 = vld [vmem:[#allocation2 + $0x50] sm:$0xff]
    %v312 = vld [vmem:[#allocation2 + $0x58] sm:$0xff]
    %v313 = vld [vmem:[#allocation2 + $0x60] sm:$0xff]
    %v314 = vld [vmem:[#allocation2 + $0x68] sm:$0xff]
    %v315 = vld [vmem:[#allocation2 + $0x70] sm:$0xff]
    %v316 = vld [vmem:[#allocation2 + $0x78] sm:$0xff]
    %v317 = vpack.c.bf16 %v302, %v301
    %v318 = vpack.c.bf16 %v304, %v303
    %v319 = vpack.c.bf16 %v306, %v305
    %v320 = vpack.c.bf16 %v308, %v307
    %v321 = vpack.c.bf16 %v310, %v309
    %v322 = vpack.c.bf16 %v312, %v311
    %v323 = vpack.c.bf16 %v314, %v313
    %v324 = vpack.c.bf16 %v316, %v315
    %v325 = vld [vmem:[%s4] sm:$0xf]
    %v326 = vld [vmem:[%s4 + $0x4] sm:$0xf]
    %v327 = vld [vmem:[%s4 + $0x8] sm:$0xf]
    %v328 = vld [vmem:[%s4 + $0xc] sm:$0xf]
    %v329 = vld [vmem:[%s4 + $0x10] sm:$0xf]
    %v330 = vld [vmem:[%s4 + $0x14] sm:$0xf]
    %v331 = vld [vmem:[%s4 + $0x18] sm:$0xf]
    %v332 = vld [vmem:[%s4 + $0x1c] sm:$0xf]
    %v333 = vld [vmem:[%s4 + $0x20] sm:$0xf]
    %v334 = vld [vmem:[%s4 + $0x24] sm:$0xf]
    %v335 = vld [vmem:[%s4 + $0x28] sm:$0xf]
    %v336 = vld [vmem:[%s4 + $0x2c] sm:$0xf]
    %v337 = vld [vmem:[%s4 + $0x30] sm:$0xf]
    %v338 = vld [vmem:[%s4 + $0x34] sm:$0xf]
    %v339 = vld [vmem:[%s4 + $0x38] sm:$0xf]
    %v340 = vld [vmem:[%s4 + $0x3c] sm:$0xf]
    %v341 = vld [vmem:[%s5] sm:$0x1]
    %v343 = vperm.slane %v341, 0
    %v361 = vunpack.c.l.b16 %v325
    %v362 = vunpack.c.l.b16 %v326
    %v363 = vunpack.c.l.b16 %v327
    %v364 = vunpack.c.l.b16 %v328
    %v365 = vunpack.c.l.b16 %v329
    %v366 = vunpack.c.l.b16 %v330
    %v367 = vunpack.c.l.b16 %v331
    %v368 = vunpack.c.l.b16 %v332
    %v369 = vunpack.c.l.b16 %v333
    %v370 = vunpack.c.l.b16 %v334
    %v371 = vunpack.c.l.b16 %v335
    %v372 = vunpack.c.l.b16 %v336
    %v373 = vunpack.c.l.b16 %v337
    %v374 = vunpack.c.l.b16 %v338
    %v375 = vunpack.c.l.b16 %v339
    %v376 = vunpack.c.l.b16 %v340
    %v377 = vpack.c.b16 %v362, %v361
    %v378 = vpack.c.b16 %v364, %v363
    %v379 = vpack.c.b16 %v366, %v365
    %v380 = vpack.c.b16 %v368, %v367
    %v381 = vpack.c.b16 %v370, %v369
    %v382 = vpack.c.b16 %v372, %v371
    %v383 = vpack.c.b16 %v374, %v373
    %v384 = vpack.c.b16 %v376, %v375
    %393 = vmatpush.bf16.msra.mxu0 %v384
    %394 = vmatpush.bf16.msra.mxu0 %v383
    %395 = vmatpush.bf16.msra.mxu0 %v382
    %396 = vmatpush.bf16.msra.mxu0 %v381
    %397 = vmatpush.bf16.msra.mxu0 %v380
    %398 = vmatpush.bf16.msra.mxu0 %v379
    %399 = vmatpush.bf16.msra.mxu0 %v378
    %400 = vmatpush.bf16.msra.mxu0 %v377
    %401 = vmatmul.bf16.gmra.mxu0 %v317
    %v402 = vpop.f32.mrf.mxu0
    %v403 = vadd.f32 %v343, %v402
    %v404 = vpop.f32.mrf.mxu0
    %v405 = vadd.f32 %v343, %v404
    %406 = vmatmul.bf16.gmra.mxu0 %v318
    %v407 = vpop.f32.mrf.mxu0
    %v408 = vadd.f32 %v343, %v407
    %v409 = vpop.f32.mrf.mxu0
    %v410 = vadd.f32 %v343, %v409
    %411 = vmatmul.bf16.gmra.mxu0 %v319
    %v412 = vpop.f32.mrf.mxu0
    %v413 = vadd.f32 %v343, %v412
    %v414 = vpop.f32.mrf.mxu0
    %v415 = vadd.f32 %v343, %v414
    %416 = vmatmul.bf16.gmra.mxu0 %v320
    %v417 = vpop.f32.mrf.mxu0
    %v418 = vadd.f32 %v343, %v417
    %v419 = vpop.f32.mrf.mxu0
    %v420 = vadd.f32 %v343, %v419
    %421 = vmatmul.bf16.gmra.mxu0 %v321
    %v422 = vpop.f32.mrf.mxu0
    %v423 = vadd.f32 %v343, %v422
    %v424 = vpop.f32.mrf.mxu0
    %v425 = vadd.f32 %v343, %v424
    %426 = vmatmul.bf16.gmra.mxu0 %v322
    %v427 = vpop.f32.mrf.mxu0
    %v428 = vadd.f32 %v343, %v427
    %v429 = vpop.f32.mrf.mxu0
    %v430 = vadd.f32 %v343, %v429
    %431 = vmatmul.bf16.gmra.mxu0 %v323
    %v432 = vpop.f32.mrf.mxu0
    %v433 = vadd.f32 %v343, %v432
    %v434 = vpop.f32.mrf.mxu0
    %v435 = vadd.f32 %v343, %v434
    %436 = vmatmul.bf16.gmra.mxu0 %v324
    %v437 = vpop.f32.mrf.mxu0
    %v438 = vadd.f32 %v343, %v437
    %v439 = vpop.f32.mrf.mxu0
    %v440 = vadd.f32 %v343, %v439
    %441 = vdwg.mxu0
    %v442 = vmax.f32 %v403, 0.0
    %v443 = vmax.f32 %v405, 0.0
    %v444 = vmax.f32 %v408, 0.0
    %v445 = vmax.f32 %v410, 0.0
    %v446 = vmax.f32 %v413, 0.0
    %v447 = vmax.f32 %v415, 0.0
    %v448 = vmax.f32 %v418, 0.0
    %v449 = vmax.f32 %v420, 0.0
    %v450 = vmax.f32 %v423, 0.0
    %v451 = vmax.f32 %v425, 0.0
    %v452 = vmax.f32 %v428, 0.0
    %v453 = vmax.f32 %v430, 0.0
    %v454 = vmax.f32 %v433, 0.0
    %v455 = vmax.f32 %v435, 0.0
    %v456 = vmax.f32 %v438, 0.0
    %v457 = vmax.f32 %v440, 0.0
    %v458 = vpack.c.bf16 %v443, %v442
    %v459 = vpack.c.bf16 %v445, %v444
    %v460 = vpack.c.bf16 %v447, %v446
    %v461 = vpack.c.bf16 %v449, %v448
    %v462 = vpack.c.bf16 %v451, %v450
    %v463 = vpack.c.bf16 %v453, %v452
    %v464 = vpack.c.bf16 %v455, %v454
    %v465 = vpack.c.bf16 %v457, %v456
    %v466 = vld [vmem:[%s6] sm:$0xf]
    %v467 = vld [vmem:[%s6 + $0x4] sm:$0xf]
    %v468 = vld [vmem:[%s6 + $0x8] sm:$0xf]
    %v469 = vld [vmem:[%s6 + $0xc] sm:$0xf]
    %v470 = vld [vmem:[%s6 + $0x10] sm:$0xf]
    %v471 = vld [vmem:[%s6 + $0x14] sm:$0xf]
    %v472 = vld [vmem:[%s6 + $0x18] sm:$0xf]
    %v473 = vld [vmem:[%s6 + $0x1c] sm:$0xf]
    %v474 = vld [vmem:[%s6 + $0x20] sm:$0xf]
    %v475 = vld [vmem:[%s6 + $0x24] sm:$0xf]
    %v476 = vld [vmem:[%s6 + $0x28] sm:$0xf]
    %v477 = vld [vmem:[%s6 + $0x2c] sm:$0xf]
    %v478 = vld [vmem:[%s6 + $0x30] sm:$0xf]
    %v479 = vld [vmem:[%s6 + $0x34] sm:$0xf]
    %v480 = vld [vmem:[%s6 + $0x38] sm:$0xf]
    %v481 = vld [vmem:[%s6 + $0x3c] sm:$0xf]
    %v482 = vld [vmem:[%s7] sm:$0x1]
    %v484 = vperm.slane %v482, 0
    %v502 = vunpack.c.l.b16 %v466
    %v503 = vunpack.c.l.b16 %v467
    %v504 = vunpack.c.l.b16 %v468
    %v505 = vunpack.c.l.b16 %v469
    %v506 = vunpack.c.l.b16 %v470
    %v507 = vunpack.c.l.b16 %v471
    %v508 = vunpack.c.l.b16 %v472
    %v509 = vunpack.c.l.b16 %v473
    %v510 = vunpack.c.l.b16 %v474
    %v511 = vunpack.c.l.b16 %v475
    %v512 = vunpack.c.l.b16 %v476
    %v513 = vunpack.c.l.b16 %v477
    %v514 = vunpack.c.l.b16 %v478
    %v515 = vunpack.c.l.b16 %v479
    %v516 = vunpack.c.l.b16 %v480
    %v517 = vunpack.c.l.b16 %v481
    %v518 = vpack.c.b16 %v503, %v502
    %v519 = vpack.c.b16 %v505, %v504
    %v520 = vpack.c.b16 %v507, %v506
    %v521 = vpack.c.b16 %v509, %v508
    %v522 = vpack.c.b16 %v511, %v510
    %v523 = vpack.c.b16 %v513, %v512
    %v524 = vpack.c.b16 %v515, %v514
    %v525 = vpack.c.b16 %v517, %v516
    %534 = vmatpush.bf16.msra.mxu0 %v525
    %535 = vmatpush.bf16.msra.mxu0 %v524
    %536 = vmatpush.bf16.msra.mxu0 %v523
    %537 = vmatpush.bf16.msra.mxu0 %v522
    %538 = vmatpush.bf16.msra.mxu0 %v521
    %539 = vmatpush.bf16.msra.mxu0 %v520
    %540 = vmatpush.bf16.msra.mxu0 %v519
    %541 = vmatpush.bf16.msra.mxu0 %v518
    %542 = vmatmul.bf16.gmra.mxu0 %v458
    %v543 = vpop.f32.mrf.mxu0
    %v544 = vadd.f32 %v484, %v543
    %v545 = vpop.f32.mrf.mxu0
    %v546 = vadd.f32 %v484, %v545
    %547 = vmatmul.bf16.gmra.mxu0 %v459
    %v548 = vpop.f32.mrf.mxu0
    %v549 = vadd.f32 %v484, %v548
    %v550 = vpop.f32.mrf.mxu0
    %v551 = vadd.f32 %v484, %v550
    %552 = vmatmul.bf16.gmra.mxu0 %v460
    %v553 = vpop.f32.mrf.mxu0
    %v554 = vadd.f32 %v484, %v553
    %v555 = vpop.f32.mrf.mxu0
    %v556 = vadd.f32 %v484, %v555
    %557 = vmatmul.bf16.gmra.mxu0 %v461
    %v558 = vpop.f32.mrf.mxu0
    %v559 = vadd.f32 %v484, %v558
    %v560 = vpop.f32.mrf.mxu0
    %v561 = vadd.f32 %v484, %v560
    %562 = vmatmul.bf16.gmra.mxu0 %v462
    %v563 = vpop.f32.mrf.mxu0
    %v564 = vadd.f32 %v484, %v563
    %v565 = vpop.f32.mrf.mxu0
    %v566 = vadd.f32 %v484, %v565
    %567 = vmatmul.bf16.gmra.mxu0 %v463
    %v568 = vpop.f32.mrf.mxu0
    %v569 = vadd.f32 %v484, %v568
    %v570 = vpop.f32.mrf.mxu0
    %v571 = vadd.f32 %v484, %v570
    %572 = vmatmul.bf16.gmra.mxu0 %v464
    %v573 = vpop.f32.mrf.mxu0
    %v574 = vadd.f32 %v484, %v573
    %v575 = vpop.f32.mrf.mxu0
    %v576 = vadd.f32 %v484, %v575
    %577 = vmatmul.bf16.gmra.mxu0 %v465
    %v578 = vpop.f32.mrf.mxu0
    %v579 = vadd.f32 %v484, %v578
    %v580 = vpop.f32.mrf.mxu0
    %v581 = vadd.f32 %v484, %v580
    %582 = vdwg.mxu0
    %v583 = vmax.f32 %v544, 0.0
    %v584 = vmax.f32 %v546, 0.0
    %v585 = vmax.f32 %v549, 0.0
    %v586 = vmax.f32 %v551, 0.0
    %v587 = vmax.f32 %v554, 0.0
    %v588 = vmax.f32 %v556, 0.0
    %v589 = vmax.f32 %v559, 0.0
    %v590 = vmax.f32 %v561, 0.0
    %v591 = vmax.f32 %v564, 0.0
    %v592 = vmax.f32 %v566, 0.0
    %v593 = vmax.f32 %v569, 0.0
    %v594 = vmax.f32 %v571, 0.0
    %v595 = vmax.f32 %v574, 0.0
    %v596 = vmax.f32 %v576, 0.0
    %v597 = vmax.f32 %v579, 0.0
    %v598 = vmax.f32 %v581, 0.0
    %v599 = vpack.c.bf16 %v583, %v583
    %v600 = vpack.c.bf16 %v584, %v584
    %v601 = vpack.c.bf16 %v585, %v585
    %v602 = vpack.c.bf16 %v586, %v586
    %v603 = vpack.c.bf16 %v587, %v587
    %v604 = vpack.c.bf16 %v588, %v588
    %v605 = vpack.c.bf16 %v589, %v589
    %v606 = vpack.c.bf16 %v590, %v590
    %v607 = vpack.c.bf16 %v591, %v591
    %v608 = vpack.c.bf16 %v592, %v592
    %v609 = vpack.c.bf16 %v593, %v593
    %v610 = vpack.c.bf16 %v594, %v594
    %v611 = vpack.c.bf16 %v595, %v595
    %v612 = vpack.c.bf16 %v596, %v596
    %v613 = vpack.c.bf16 %v597, %v597
    %v614 = vpack.c.bf16 %v598, %v598
    %615 = vst [vmem:[%s8] sm:$0xf] %v599
    %616 = vst [vmem:[%s8 + $0x4] sm:$0xf] %v600
    %617 = vst [vmem:[%s8 + $0x8] sm:$0xf] %v601
    %618 = vst [vmem:[%s8 + $0xc] sm:$0xf] %v602
    %619 = vst [vmem:[%s8 + $0x10] sm:$0xf] %v603
    %620 = vst [vmem:[%s8 + $0x14] sm:$0xf] %v604
    %621 = vst [vmem:[%s8 + $0x18] sm:$0xf] %v605
    %622 = vst [vmem:[%s8 + $0x1c] sm:$0xf] %v606
    %623 = vst [vmem:[%s8 + $0x20] sm:$0xf] %v607
    %624 = vst [vmem:[%s8 + $0x24] sm:$0xf] %v608
    %625 = vst [vmem:[%s8 + $0x28] sm:$0xf] %v609
    %626 = vst [vmem:[%s8 + $0x2c] sm:$0xf] %v610
    %627 = vst [vmem:[%s8 + $0x30] sm:$0xf] %v611
    %628 = vst [vmem:[%s8 + $0x34] sm:$0xf] %v612
    %629 = vst [vmem:[%s8 + $0x38] sm:$0xf] %v613
    %630 = vst [vmem:[%s8 + $0x3c] sm:$0xf] %v614
  $region37: #{gin_forward.3} parent=0 // pred_fallthru
    _
  // Predicated region
  $region38: #{gin_forward.3} parent=0 // pred_check
    _
  $region39: #{gin_forward.3} parent=0 // pred_check_branch
    %632 = sbr.rel (0) target = $region41
  $region40: #{gin_forward.3} parent=0 // pred_region
    _
  $region41: #{gin_forward.3} parent=0 // pred_fallthru
    _
  // Predicated region
  $region42: #{gin_forward.3} parent=0 // pred_check
    _
  $region43: #{gin_forward.3} parent=0 // pred_check_branch
    %634 = sbr.rel (0) target = $region45
  $region44: #{gin_forward.3} parent=0 // pred_region
    _
  $region45: #{gin_forward.3} parent=0 // pred_fallthru
    _

// kernel: gin_forward.5
$region0: #{gin_forward.5}
  #allocation0 [shape = 'u32[]', space=smem, size = 0x4, offset = 0x4, fixed_abs, tag = 'smem constant byte address 0x4 - core index']
  #allocation1 [shape = 'u32[72,128]{1,0:T(1,128)}', space=vmem, size = 0x9000, scoped, tag = 'internal scratch']
  #allocation2 [shape = 'f32[128,128]{1,0:T(8,128)}', space=vmem, size = 0x10000, scoped, tag = 'scratch operand']
  #allocation3 [shape = 's32[1]{0}', space=sflag, size = 0x4, scoped, tag = 'scoped memory for gin_forward.5']
  #allocation4 [shape = 's32[1,1]{1,0:T(1,128)S(6)}', space=smem, size = 0x200, scoped, tag = 'prefetched SMEM operand 0']
  #allocation5 [shape = 's32[1]{0:T(128)S(6)}', space=smem, size = 0x200, scoped, tag = 'prefetched SMEM operand 1']
  %s0 = inlined_call_operand.<no memory space> [shape: s32[1,1], index: 0, kind: input, shape index: {}]
  %s1 = inlined_call_operand.<no memory space> [shape: s32[1], index: 1, kind: input, shape index: {}]
  %s2 = inlined_call_operand.vmem [shape: s8[128,128], index: 2, kind: input, shape index: {}]
  %s3 = inlined_call_operand.vmem [shape: bf16[128,128], index: 3, kind: input, shape index: {}]
  %s4 = inlined_call_operand.vmem [shape: bf16[128,128], index: 4, kind: input, shape index: {}]
  %s5 = inlined_call_operand.vmem [shape: f32[1,128], index: 5, kind: input, shape index: {}]
  %s6 = inlined_call_operand.vmem [shape: bf16[128,128], index: 6, kind: input, shape index: {}]
  %s7 = inlined_call_operand.vmem [shape: f32[1,128], index: 7, kind: input, shape index: {}]
  %s8 = inlined_call_operand.vmem [shape: f32[8,128], index: 8, kind: input, shape index: {}]
  %s9 = inlined_call_operand.vmem [shape: f32[8,128], index: 9, kind: output, shape index: {}]
  %s10 = sld [smem:[#allocation0]]
  $region54: #{gin_forward.5} parent=0
    _
  %s12 = ssub.s32 1, %s10
  %s13 = scalar_select 0, %s12, %s10
  %14 = sst [smem:[#allocation4]] %s0
  %15 = sst [smem:[#allocation5]] %s1
  // Predicated region
  $region2: #{gin_forward.5} parent=0 // pred_check
    _
  $region3: #{gin_forward.5} parent=0 // pred_check_branch
    %17 = sbr.rel (0) target = $region5
  $region4: #{gin_forward.5} parent=0 // pred_region
    %s18 = sadd.s32 0, 0
    %s19 = smul.u32 %s18, 128
    %s20 = sadd.s32 %s19, 0
    %s21 = sld [smem:[#allocation4 + %s20]]
    %p22 = scmp.lt.s32.totalorder %s21, 0
    %s23 = scalar_select %p22, %s21, 0
    %s24 = smul.addr %s23, 8
    %s25 = scalar_lea.vmem %s2, %s24
    %s26 = sadd.s32 0, 0
    %s27 = smul.u32 %s26, 128
    %s28 = sadd.s32 %s27, 0
    %s29 = sld [smem:[#allocation4 + %s28]]
  $region5: #{gin_forward.5} parent=0 // pred_fallthru
    _
  // Predicated region
  $region6: #{gin_forward.5} parent=0 // pred_check
    _
  $region7: #{gin_forward.5} parent=0 // pred_check_branch
    %31 = sbr.rel (0) target = $region9
  $region8: #{gin_forward.5} parent=0 // pred_region
    _
  $region9: #{gin_forward.5} parent=0 // pred_fallthru
    _
  // Predicated region
  $region10: #{gin_forward.5} parent=0 // pred_check
    _
  $region11: #{gin_forward.5} parent=0 // pred_check_branch
    %33 = sbr.rel (0) target = $region13
  $region12: #{gin_forward.5} parent=0 // pred_region
    _
  $region13: #{gin_forward.5} parent=0 // pred_fallthru
    _
  // Predicated region
  $region14: #{gin_forward.5} parent=0 // pred_check
    _
  $region15: #{gin_forward.5} parent=0 // pred_check_branch
    %35 = sbr.rel (0) target = $region17
  $region16: #{gin_forward.5} parent=0 // pred_region
    _
  $region17: #{gin_forward.5} parent=0 // pred_fallthru
    _
  // Predicated region
  $region18: #{gin_forward.5} parent=0 // pred_check
    _
  $region19: #{gin_forward.5} parent=0 // pred_check_branch
    %37 = sbr.rel (0) target = $region21
  $region20: #{gin_forward.5} parent=0 // pred_region
    _
  $region21: #{gin_forward.5} parent=0 // pred_fallthru
    _
  // Predicated region
  $region22: #{gin_forward.5} parent=0 // pred_check
    _
  $region23: #{gin_forward.5} parent=0 // pred_check_branch
    %39 = sbr.rel (0) target = $region25
  $region24: #{gin_forward.5} parent=0 // pred_region
    _
  $region25: #{gin_forward.5} parent=0 // pred_fallthru
    _
  // Predicated region
  $region26: #{gin_forward.5} parent=0 // pred_check
    _
  $region27: #{gin_forward.5} parent=0 // pred_check_branch
    %41 = sbr.rel (0) target = $region29
  $region28: #{gin_forward.5} parent=0 // pred_region
    _
  $region29: #{gin_forward.5} parent=0 // pred_fallthru
    _
  %s42 = sadd.s32 0, 0
  %s43 = smul.u32 %s42, 128
  %s44 = sadd.s32 %s43, 0
  %s45 = sld [smem:[#allocation4 + %s44]]
  %p46 = scmp.lt.s32.totalorder %s45, 0
  %s47 = scalar_select %p46, %s45, 0
  %s48 = smul.addr %s47, 8
  %s49 = scalar_lea.vmem %s2, %s48
  %s50 = sadd.s32 0, 0
  %s51 = smul.u32 %s50, 128
  %s52 = sadd.s32 %s51, 0
  %s53 = sld [smem:[#allocation4 + %s52]]
  %p54 = scmp.lt.s32.totalorder %s53, 0
  %s55 = scalar_select %p54, %s53, 0
  %s56 = smul.addr %s55, 8
  %s57 = scalar_lea.vmem %s2, %s56
  %s58 = sadd.s32 0, 0
  %s59 = smul.u32 %s58, 128
  %s60 = sadd.s32 %s59, 0
  %s61 = sld [smem:[#allocation4 + %s60]]
  %p62 = scmp.eq.s32.totalorder 0, 0
  %p63 = scmp.eq.s32.totalorder 0, 0
  %p64 = pnand %p62, %p63
  %p65 = pneg %p64
  // Predicated region
  $region30: #{gin_forward.5} parent=0 // pred_check
    _
  $region31: #{gin_forward.5} parent=0 // pred_check_branch
    %67 = sbr.rel (%p64) target = $region33
  $region32: #{gin_forward.5} parent=0 // pred_region
    %68 = vst [vmem:[%s9] sm:$0xff] 0.0
  $region33: #{gin_forward.5} parent=0 // pred_fallthru
    _
  // Predicated region
  $region34: #{gin_forward.5} parent=0 // pred_check
    %p69 = pneg %p63
  $region35: #{gin_forward.5} parent=0 // pred_check_branch
    %71 = sbr.rel (%p69) target = $region37
  $region36: #{gin_forward.5} parent=0 // pred_region
    %72 = vst [vmem:[#allocation2] sm:$0xff] 0.0
    %73 = vst [vmem:[#allocation2 + $0x8] sm:$0xff] 0.0
    %74 = vst [vmem:[#allocation2 + $0x10] sm:$0xff] 0.0
    %75 = vst [vmem:[#allocation2 + $0x18] sm:$0xff] 0.0
    %76 = vst [vmem:[#allocation2 + $0x20] sm:$0xff] 0.0
    %77 = vst [vmem:[#allocation2 + $0x28] sm:$0xff] 0.0
    %78 = vst [vmem:[#allocation2 + $0x30] sm:$0xff] 0.0
    %79 = vst [vmem:[#allocation2 + $0x38] sm:$0xff] 0.0
    %80 = vst [vmem:[#allocation2 + $0x40] sm:$0xff] 0.0
    %81 = vst [vmem:[#allocation2 + $0x48] sm:$0xff] 0.0
    %82 = vst [vmem:[#allocation2 + $0x50] sm:$0xff] 0.0
    %83 = vst [vmem:[#allocation2 + $0x58] sm:$0xff] 0.0
    %84 = vst [vmem:[#allocation2 + $0x60] sm:$0xff] 0.0
    %85 = vst [vmem:[#allocation2 + $0x68] sm:$0xff] 0.0
    %86 = vst [vmem:[#allocation2 + $0x70] sm:$0xff] 0.0
    %87 = vst [vmem:[#allocation2 + $0x78] sm:$0xff] 0.0
  $region37: #{gin_forward.5} parent=0 // pred_fallthru
    _
  %s88 = sld [smem:[#allocation5]]
  %p89 = scmp.lt.s32.totalorder 0, %s88
  // Predicated region
  $region38: #{gin_forward.5} parent=0 // pred_check
    %p90 = pneg %p89
  $region39: #{gin_forward.5} parent=0 // pred_check_branch
    %92 = sbr.rel (%p90) target = $region41
  $region40: #{gin_forward.5} parent=0 // pred_region
    %v93 = vld [vmem:[%s57] sm:$0xff]
    %v94 = vld [vmem:[%s57 + $0x8] sm:$0xff]
    %v95 = vld [vmem:[%s57 + $0x10] sm:$0xff]
    %v96 = vld [vmem:[%s57 + $0x18] sm:$0xff]
    %v97 = vunpack.c.0.s8 %v93
    %v98 = vunpack.c.1.s8 %v93
    %v99 = vunpack.c.2.s8 %v93
    %v100 = vunpack.c.3.s8 %v93
    %v101 = vunpack.c.0.s8 %v94
    %v102 = vunpack.c.1.s8 %v94
    %v103 = vunpack.c.2.s8 %v94
    %v104 = vunpack.c.3.s8 %v94
    %v105 = vunpack.c.0.s8 %v95
    %v106 = vunpack.c.1.s8 %v95
    %v107 = vunpack.c.2.s8 %v95
    %v108 = vunpack.c.3.s8 %v95
    %v109 = vunpack.c.0.s8 %v96
    %v110 = vunpack.c.1.s8 %v96
    %v111 = vunpack.c.2.s8 %v96
    %v112 = vunpack.c.3.s8 %v96
    %v113 = vcvt.s32.f32 %v97
    %v114 = vcvt.s32.f32 %v98
    %v115 = vcvt.s32.f32 %v99
    %v116 = vcvt.s32.f32 %v100
    %v117 = vcvt.s32.f32 %v101
    %v118 = vcvt.s32.f32 %v102
    %v119 = vcvt.s32.f32 %v103
    %v120 = vcvt.s32.f32 %v104
    %v121 = vcvt.s32.f32 %v105
    %v122 = vcvt.s32.f32 %v106
    %v123 = vcvt.s32.f32 %v107
    %v124 = vcvt.s32.f32 %v108
    %v125 = vcvt.s32.f32 %v109
    %v126 = vcvt.s32.f32 %v110
    %v127 = vcvt.s32.f32 %v111
    %v128 = vcvt.s32.f32 %v112
    %v129 = vpack.c.bf16 %v114, %v113
    %v130 = vpack.c.bf16 %v116, %v115
    %v131 = vpack.c.bf16 %v118, %v117
    %v132 = vpack.c.bf16 %v120, %v119
    %v133 = vpack.c.bf16 %v122, %v121
    %v134 = vpack.c.bf16 %v124, %v123
    %v135 = vpack.c.bf16 %v126, %v125
    %v136 = vpack.c.bf16 %v128, %v127
    %s137 = sadd.s32 0, 0
    %s138 = smul.u32 %s137, 128
    %s139 = sadd.s32 %s138, 0
    %s140 = sld [smem:[#allocation4 + %s139]]
    %s141 = smul.u32 %s140, 128
    %s142 = sshra.s32 %s141, 3
    %s143 = sand.u32 %s141, 7
    %s144 = smul.addr %s142, 4
    %s145 = scalar_lea.vmem %s3, %s144
    %v146 = vld [vmem:[%s145] sm:$0xf]
    %v147 = vld [vmem:[%s145 + $0x4] sm:$0xf]
    %v148 = vld [vmem:[%s145 + $0x8] sm:$0xf]
    %v149 = vld [vmem:[%s145 + $0xc] sm:$0xf]
    %v150 = vld [vmem:[%s145 + $0x10] sm:$0xf]
    %v151 = vld [vmem:[%s145 + $0x14] sm:$0xf]
    %v152 = vld [vmem:[%s145 + $0x18] sm:$0xf]
    %v153 = vld [vmem:[%s145 + $0x1c] sm:$0xf]
    %v154 = vld [vmem:[%s145 + $0x20] sm:$0xf]
    %v155 = vld [vmem:[%s145 + $0x24] sm:$0xf]
    %v156 = vld [vmem:[%s145 + $0x28] sm:$0xf]
    %v157 = vld [vmem:[%s145 + $0x2c] sm:$0xf]
    %v158 = vld [vmem:[%s145 + $0x30] sm:$0xf]
    %v159 = vld [vmem:[%s145 + $0x34] sm:$0xf]
    %v160 = vld [vmem:[%s145 + $0x38] sm:$0xf]
    %v161 = vld [vmem:[%s145 + $0x3c] sm:$0xf]
    %v162 = vld [vmem:[#allocation2] sm:$0xff]
    %v163 = vld [vmem:[#allocation2 + $0x8] sm:$0xff]
    %v164 = vld [vmem:[#allocation2 + $0x10] sm:$0xff]
    %v165 = vld [vmem:[#allocation2 + $0x18] sm:$0xff]
    %v166 = vld [vmem:[#allocation2 + $0x20] sm:$0xff]
    %v167 = vld [vmem:[#allocation2 + $0x28] sm:$0xff]
    %v168 = vld [vmem:[#allocation2 + $0x30] sm:$0xff]
    %v169 = vld [vmem:[#allocation2 + $0x38] sm:$0xff]
    %v170 = vld [vmem:[#allocation2 + $0x40] sm:$0xff]
    %v171 = vld [vmem:[#allocation2 + $0x48] sm:$0xff]
    %v172 = vld [vmem:[#allocation2 + $0x50] sm:$0xff]
    %v173 = vld [vmem:[#allocation2 + $0x58] sm:$0xff]
    %v174 = vld [vmem:[#allocation2 + $0x60] sm:$0xff]
    %v175 = vld [vmem:[#allocation2 + $0x68] sm:$0xff]
    %v176 = vld [vmem:[#allocation2 + $0x70] sm:$0xff]
    %v177 = vld [vmem:[#allocation2 + $0x78] sm:$0xff]
    %v194 = vunpack.c.l.b16 %v146
    %v195 = vunpack.c.l.b16 %v147
    %v196 = vunpack.c.l.b16 %v148
    %v197 = vunpack.c.l.b16 %v149
    %v198 = vunpack.c.l.b16 %v150
    %v199 = vunpack.c.l.b16 %v151
    %v200 = vunpack.c.l.b16 %v152
    %v201 = vunpack.c.l.b16 %v153
    %v202 = vunpack.c.l.b16 %v154
    %v203 = vunpack.c.l.b16 %v155
    %v204 = vunpack.c.l.b16 %v156
    %v205 = vunpack.c.l.b16 %v157
    %v206 = vunpack.c.l.b16 %v158
    %v207 = vunpack.c.l.b16 %v159
    %v208 = vunpack.c.l.b16 %v160
    %v209 = vunpack.c.l.b16 %v161
    %v210 = vpack.c.b16 %v195, %v194
    %v211 = vpack.c.b16 %v197, %v196
    %v212 = vpack.c.b16 %v199, %v198
    %v213 = vpack.c.b16 %v201, %v200
    %v214 = vpack.c.b16 %v203, %v202
    %v215 = vpack.c.b16 %v205, %v204
    %v216 = vpack.c.b16 %v207, %v206
    %v217 = vpack.c.b16 %v209, %v208
    %226 = vmatpush.bf16.msra.mxu0 %v217
    %227 = vmatpush.bf16.msra.mxu0 %v216
    %228 = vmatpush.bf16.msra.mxu0 %v215
    %229 = vmatpush.bf16.msra.mxu0 %v214
    %230 = vmatpush.bf16.msra.mxu0 %v213
    %231 = vmatpush.bf16.msra.mxu0 %v212
    %232 = vmatpush.bf16.msra.mxu0 %v211
    %233 = vmatpush.bf16.msra.mxu0 %v210
    %234 = vmatmul.bf16.gmra.mxu0 %v129
    %v235 = vpop.f32.mrf.mxu0
    %v236 = vadd.f32 0.0, %v235
    %v237 = vpop.f32.mrf.mxu0
    %v238 = vadd.f32 0.0, %v237
    %239 = vmatmul.bf16.gmra.mxu0 %v130
    %v240 = vpop.f32.mrf.mxu0
    %v241 = vadd.f32 0.0, %v240
    %v242 = vpop.f32.mrf.mxu0
    %v243 = vadd.f32 0.0, %v242
    %244 = vmatmul.bf16.gmra.mxu0 %v131
    %v245 = vpop.f32.mrf.mxu0
    %v246 = vadd.f32 0.0, %v245
    %v247 = vpop.f32.mrf.mxu0
    %v248 = vadd.f32 0.0, %v247
    %249 = vmatmul.bf16.gmra.mxu0 %v132
    %v250 = vpop.f32.mrf.mxu0
    %v251 = vadd.f32 0.0, %v250
    %v252 = vpop.f32.mrf.mxu0
    %v253 = vadd.f32 0.0, %v252
    %254 = vmatmul.bf16.gmra.mxu0 %v133
    %v255 = vpop.f32.mrf.mxu0
    %v256 = vadd.f32 0.0, %v255
    %v257 = vpop.f32.mrf.mxu0
    %v258 = vadd.f32 0.0, %v257
    %259 = vmatmul.bf16.gmra.mxu0 %v134
    %v260 = vpop.f32.mrf.mxu0
    %v261 = vadd.f32 0.0, %v260
    %v262 = vpop.f32.mrf.mxu0
    %v263 = vadd.f32 0.0, %v262
    %264 = vmatmul.bf16.gmra.mxu0 %v135
    %v265 = vpop.f32.mrf.mxu0
    %v266 = vadd.f32 0.0, %v265
    %v267 = vpop.f32.mrf.mxu0
    %v268 = vadd.f32 0.0, %v267
    %269 = vmatmul.bf16.gmra.mxu0 %v136
    %v270 = vpop.f32.mrf.mxu0
    %v271 = vadd.f32 0.0, %v270
    %v272 = vpop.f32.mrf.mxu0
    %v273 = vadd.f32 0.0, %v272
    %274 = vdwg.mxu0
    %v275 = vadd.f32 %v162, %v236
    %v276 = vadd.f32 %v163, %v238
    %v277 = vadd.f32 %v164, %v241
    %v278 = vadd.f32 %v165, %v243
    %v279 = vadd.f32 %v166, %v246
    %v280 = vadd.f32 %v167, %v248
    %v281 = vadd.f32 %v168, %v251
    %v282 = vadd.f32 %v169, %v253
    %v283 = vadd.f32 %v170, %v256
    %v284 = vadd.f32 %v171, %v258
    %v285 = vadd.f32 %v172, %v261
    %v286 = vadd.f32 %v173, %v263
    %v287 = vadd.f32 %v174, %v266
    %v288 = vadd.f32 %v175, %v268
    %v289 = vadd.f32 %v176, %v271
    %v290 = vadd.f32 %v177, %v273
    %291 = vst [vmem:[#allocation2] sm:$0xff] %v275
    %292 = vst [vmem:[#allocation2 + $0x8] sm:$0xff] %v276
    %293 = vst [vmem:[#allocation2 + $0x10] sm:$0xff] %v277
    %294 = vst [vmem:[#allocation2 + $0x18] sm:$0xff] %v278
    %295 = vst [vmem:[#allocation2 + $0x20] sm:$0xff] %v279
    %296 = vst [vmem:[#allocation2 + $0x28] sm:$0xff] %v280
    %297 = vst [vmem:[#allocation2 + $0x30] sm:$0xff] %v281
    %298 = vst [vmem:[#allocation2 + $0x38] sm:$0xff] %v282
    %299 = vst [vmem:[#allocation2 + $0x40] sm:$0xff] %v283
    %300 = vst [vmem:[#allocation2 + $0x48] sm:$0xff] %v284
    %301 = vst [vmem:[#allocation2 + $0x50] sm:$0xff] %v285
    %302 = vst [vmem:[#allocation2 + $0x58] sm:$0xff] %v286
    %303 = vst [vmem:[#allocation2 + $0x60] sm:$0xff] %v287
    %304 = vst [vmem:[#allocation2 + $0x68] sm:$0xff] %v288
    %305 = vst [vmem:[#allocation2 + $0x70] sm:$0xff] %v289
    %306 = vst [vmem:[#allocation2 + $0x78] sm:$0xff] %v290
  $region41: #{gin_forward.5} parent=0 // pred_fallthru
    _
  // Predicated region
  $region42: #{gin_forward.5} parent=0 // pred_check
    %p307 = pneg %p63
  $region43: #{gin_forward.5} parent=0 // pred_check_branch
    %309 = sbr.rel (%p307) target = $region45
  $region44: #{gin_forward.5} parent=0 // pred_region
    %v310 = vld [vmem:[#allocation2] sm:$0xff]
    %v311 = vld [vmem:[#allocation2 + $0x8] sm:$0xff]
    %v312 = vld [vmem:[#allocation2 + $0x10] sm:$0xff]
    %v313 = vld [vmem:[#allocation2 + $0x18] sm:$0xff]
    %v314 = vld [vmem:[#allocation2 + $0x20] sm:$0xff]
    %v315 = vld [vmem:[#allocation2 + $0x28] sm:$0xff]
    %v316 = vld [vmem:[#allocation2 + $0x30] sm:$0xff]
    %v317 = vld [vmem:[#allocation2 + $0x38] sm:$0xff]
    %v318 = vld [vmem:[#allocation2 + $0x40] sm:$0xff]
    %v319 = vld [vmem:[#allocation2 + $0x48] sm:$0xff]
    %v320 = vld [vmem:[#allocation2 + $0x50] sm:$0xff]
    %v321 = vld [vmem:[#allocation2 + $0x58] sm:$0xff]
    %v322 = vld [vmem:[#allocation2 + $0x60] sm:$0xff]
    %v323 = vld [vmem:[#allocation2 + $0x68] sm:$0xff]
    %v324 = vld [vmem:[#allocation2 + $0x70] sm:$0xff]
    %v325 = vld [vmem:[#allocation2 + $0x78] sm:$0xff]
    %v326 = vpack.c.bf16 %v311, %v310
    %v327 = vpack.c.bf16 %v313, %v312
    %v328 = vpack.c.bf16 %v315, %v314
    %v329 = vpack.c.bf16 %v317, %v316
    %v330 = vpack.c.bf16 %v319, %v318
    %v331 = vpack.c.bf16 %v321, %v320
    %v332 = vpack.c.bf16 %v323, %v322
    %v333 = vpack.c.bf16 %v325, %v324
    %v334 = vld [vmem:[%s4] sm:$0xf]
    %v335 = vld [vmem:[%s4 + $0x4] sm:$0xf]
    %v336 = vld [vmem:[%s4 + $0x8] sm:$0xf]
    %v337 = vld [vmem:[%s4 + $0xc] sm:$0xf]
    %v338 = vld [vmem:[%s4 + $0x10] sm:$0xf]
    %v339 = vld [vmem:[%s4 + $0x14] sm:$0xf]
    %v340 = vld [vmem:[%s4 + $0x18] sm:$0xf]
    %v341 = vld [vmem:[%s4 + $0x1c] sm:$0xf]
    %v342 = vld [vmem:[%s4 + $0x20] sm:$0xf]
    %v343 = vld [vmem:[%s4 + $0x24] sm:$0xf]
    %v344 = vld [vmem:[%s4 + $0x28] sm:$0xf]
    %v345 = vld [vmem:[%s4 + $0x2c] sm:$0xf]
    %v346 = vld [vmem:[%s4 + $0x30] sm:$0xf]
    %v347 = vld [vmem:[%s4 + $0x34] sm:$0xf]
    %v348 = vld [vmem:[%s4 + $0x38] sm:$0xf]
    %v349 = vld [vmem:[%s4 + $0x3c] sm:$0xf]
    %v350 = vld [vmem:[%s5] sm:$0x1]
    %v352 = vperm.slane %v350, 0
    %v370 = vunpack.c.l.b16 %v334
    %v371 = vunpack.c.l.b16 %v335
    %v372 = vunpack.c.l.b16 %v336
    %v373 = vunpack.c.l.b16 %v337
    %v374 = vunpack.c.l.b16 %v338
    %v375 = vunpack.c.l.b16 %v339
    %v376 = vunpack.c.l.b16 %v340
    %v377 = vunpack.c.l.b16 %v341
    %v378 = vunpack.c.l.b16 %v342
    %v379 = vunpack.c.l.b16 %v343
    %v380 = vunpack.c.l.b16 %v344
    %v381 = vunpack.c.l.b16 %v345
    %v382 = vunpack.c.l.b16 %v346
    %v383 = vunpack.c.l.b16 %v347
    %v384 = vunpack.c.l.b16 %v348
    %v385 = vunpack.c.l.b16 %v349
    %v386 = vpack.c.b16 %v371, %v370
    %v387 = vpack.c.b16 %v373, %v372
    %v388 = vpack.c.b16 %v375, %v374
    %v389 = vpack.c.b16 %v377, %v376
    %v390 = vpack.c.b16 %v379, %v378
    %v391 = vpack.c.b16 %v381, %v380
    %v392 = vpack.c.b16 %v383, %v382
    %v393 = vpack.c.b16 %v385, %v384
    %402 = vmatpush.bf16.msra.mxu0 %v393
    %403 = vmatpush.bf16.msra.mxu0 %v392
    %404 = vmatpush.bf16.msra.mxu0 %v391
    %405 = vmatpush.bf16.msra.mxu0 %v390
    %406 = vmatpush.bf16.msra.mxu0 %v389
    %407 = vmatpush.bf16.msra.mxu0 %v388
    %408 = vmatpush.bf16.msra.mxu0 %v387
    %409 = vmatpush.bf16.msra.mxu0 %v386
    %410 = vmatmul.bf16.gmra.mxu0 %v326
    %v411 = vpop.f32.mrf.mxu0
    %v412 = vadd.f32 %v352, %v411
    %v413 = vpop.f32.mrf.mxu0
    %v414 = vadd.f32 %v352, %v413
    %415 = vmatmul.bf16.gmra.mxu0 %v327
    %v416 = vpop.f32.mrf.mxu0
    %v417 = vadd.f32 %v352, %v416
    %v418 = vpop.f32.mrf.mxu0
    %v419 = vadd.f32 %v352, %v418
    %420 = vmatmul.bf16.gmra.mxu0 %v328
    %v421 = vpop.f32.mrf.mxu0
    %v422 = vadd.f32 %v352, %v421
    %v423 = vpop.f32.mrf.mxu0
    %v424 = vadd.f32 %v352, %v423
    %425 = vmatmul.bf16.gmra.mxu0 %v329
    %v426 = vpop.f32.mrf.mxu0
    %v427 = vadd.f32 %v352, %v426
    %v428 = vpop.f32.mrf.mxu0
    %v429 = vadd.f32 %v352, %v428
    %430 = vmatmul.bf16.gmra.mxu0 %v330
    %v431 = vpop.f32.mrf.mxu0
    %v432 = vadd.f32 %v352, %v431
    %v433 = vpop.f32.mrf.mxu0
    %v434 = vadd.f32 %v352, %v433
    %435 = vmatmul.bf16.gmra.mxu0 %v331
    %v436 = vpop.f32.mrf.mxu0
    %v437 = vadd.f32 %v352, %v436
    %v438 = vpop.f32.mrf.mxu0
    %v439 = vadd.f32 %v352, %v438
    %440 = vmatmul.bf16.gmra.mxu0 %v332
    %v441 = vpop.f32.mrf.mxu0
    %v442 = vadd.f32 %v352, %v441
    %v443 = vpop.f32.mrf.mxu0
    %v444 = vadd.f32 %v352, %v443
    %445 = vmatmul.bf16.gmra.mxu0 %v333
    %v446 = vpop.f32.mrf.mxu0
    %v447 = vadd.f32 %v352, %v446
    %v448 = vpop.f32.mrf.mxu0
    %v449 = vadd.f32 %v352, %v448
    %450 = vdwg.mxu0
    %v451 = vmax.f32 %v412, 0.0
    %v452 = vmax.f32 %v414, 0.0
    %v453 = vmax.f32 %v417, 0.0
    %v454 = vmax.f32 %v419, 0.0
    %v455 = vmax.f32 %v422, 0.0
    %v456 = vmax.f32 %v424, 0.0
    %v457 = vmax.f32 %v427, 0.0
    %v458 = vmax.f32 %v429, 0.0
    %v459 = vmax.f32 %v432, 0.0
    %v460 = vmax.f32 %v434, 0.0
    %v461 = vmax.f32 %v437, 0.0
    %v462 = vmax.f32 %v439, 0.0
    %v463 = vmax.f32 %v442, 0.0
    %v464 = vmax.f32 %v444, 0.0
    %v465 = vmax.f32 %v447, 0.0
    %v466 = vmax.f32 %v449, 0.0
    %v467 = vpack.c.bf16 %v452, %v451
    %v468 = vpack.c.bf16 %v454, %v453
    %v469 = vpack.c.bf16 %v456, %v455
    %v470 = vpack.c.bf16 %v458, %v457
    %v471 = vpack.c.bf16 %v460, %v459
    %v472 = vpack.c.bf16 %v462, %v461
    %v473 = vpack.c.bf16 %v464, %v463
    %v474 = vpack.c.bf16 %v466, %v465
    %v475 = vld [vmem:[%s6] sm:$0xf]
    %v476 = vld [vmem:[%s6 + $0x4] sm:$0xf]
    %v477 = vld [vmem:[%s6 + $0x8] sm:$0xf]
    %v478 = vld [vmem:[%s6 + $0xc] sm:$0xf]
    %v479 = vld [vmem:[%s6 + $0x10] sm:$0xf]
    %v480 = vld [vmem:[%s6 + $0x14] sm:$0xf]
    %v481 = vld [vmem:[%s6 + $0x18] sm:$0xf]
    %v482 = vld [vmem:[%s6 + $0x1c] sm:$0xf]
    %v483 = vld [vmem:[%s6 + $0x20] sm:$0xf]
    %v484 = vld [vmem:[%s6 + $0x24] sm:$0xf]
    %v485 = vld [vmem:[%s6 + $0x28] sm:$0xf]
    %v486 = vld [vmem:[%s6 + $0x2c] sm:$0xf]
    %v487 = vld [vmem:[%s6 + $0x30] sm:$0xf]
    %v488 = vld [vmem:[%s6 + $0x34] sm:$0xf]
    %v489 = vld [vmem:[%s6 + $0x38] sm:$0xf]
    %v490 = vld [vmem:[%s6 + $0x3c] sm:$0xf]
    %v491 = vld [vmem:[%s7] sm:$0x1]
    %v493 = vperm.slane %v491, 0
    %v511 = vunpack.c.l.b16 %v475
    %v512 = vunpack.c.l.b16 %v476
    %v513 = vunpack.c.l.b16 %v477
    %v514 = vunpack.c.l.b16 %v478
    %v515 = vunpack.c.l.b16 %v479
    %v516 = vunpack.c.l.b16 %v480
    %v517 = vunpack.c.l.b16 %v481
    %v518 = vunpack.c.l.b16 %v482
    %v519 = vunpack.c.l.b16 %v483
    %v520 = vunpack.c.l.b16 %v484
    %v521 = vunpack.c.l.b16 %v485
    %v522 = vunpack.c.l.b16 %v486
    %v523 = vunpack.c.l.b16 %v487
    %v524 = vunpack.c.l.b16 %v488
    %v525 = vunpack.c.l.b16 %v489
    %v526 = vunpack.c.l.b16 %v490
    %v527 = vpack.c.b16 %v512, %v511
    %v528 = vpack.c.b16 %v514, %v513
    %v529 = vpack.c.b16 %v516, %v515
    %v530 = vpack.c.b16 %v518, %v517
    %v531 = vpack.c.b16 %v520, %v519
    %v532 = vpack.c.b16 %v522, %v521
    %v533 = vpack.c.b16 %v524, %v523
    %v534 = vpack.c.b16 %v526, %v525
    %543 = vmatpush.bf16.msra.mxu0 %v534
    %544 = vmatpush.bf16.msra.mxu0 %v533
    %545 = vmatpush.bf16.msra.mxu0 %v532
    %546 = vmatpush.bf16.msra.mxu0 %v531
    %547 = vmatpush.bf16.msra.mxu0 %v530
    %548 = vmatpush.bf16.msra.mxu0 %v529
    %549 = vmatpush.bf16.msra.mxu0 %v528
    %550 = vmatpush.bf16.msra.mxu0 %v527
    %551 = vmatmul.bf16.gmra.mxu0 %v467
    %v552 = vpop.f32.mrf.mxu0
    %v553 = vadd.f32 %v493, %v552
    %v554 = vpop.f32.mrf.mxu0
    %v555 = vadd.f32 %v493, %v554
    %556 = vmatmul.bf16.gmra.mxu0 %v468
    %v557 = vpop.f32.mrf.mxu0
    %v558 = vadd.f32 %v493, %v557
    %v559 = vpop.f32.mrf.mxu0
    %v560 = vadd.f32 %v493, %v559
    %561 = vmatmul.bf16.gmra.mxu0 %v469
    %v562 = vpop.f32.mrf.mxu0
    %v563 = vadd.f32 %v493, %v562
    %v564 = vpop.f32.mrf.mxu0
    %v565 = vadd.f32 %v493, %v564
    %566 = vmatmul.bf16.gmra.mxu0 %v470
    %v567 = vpop.f32.mrf.mxu0
    %v568 = vadd.f32 %v493, %v567
    %v569 = vpop.f32.mrf.mxu0
    %v570 = vadd.f32 %v493, %v569
    %571 = vmatmul.bf16.gmra.mxu0 %v471
    %v572 = vpop.f32.mrf.mxu0
    %v573 = vadd.f32 %v493, %v572
    %v574 = vpop.f32.mrf.mxu0
    %v575 = vadd.f32 %v493, %v574
    %576 = vmatmul.bf16.gmra.mxu0 %v472
    %v577 = vpop.f32.mrf.mxu0
    %v578 = vadd.f32 %v493, %v577
    %v579 = vpop.f32.mrf.mxu0
    %v580 = vadd.f32 %v493, %v579
    %581 = vmatmul.bf16.gmra.mxu0 %v473
    %v582 = vpop.f32.mrf.mxu0
    %v583 = vadd.f32 %v493, %v582
    %v584 = vpop.f32.mrf.mxu0
    %v585 = vadd.f32 %v493, %v584
    %586 = vmatmul.bf16.gmra.mxu0 %v474
    %v587 = vpop.f32.mrf.mxu0
    %v588 = vadd.f32 %v493, %v587
    %v589 = vpop.f32.mrf.mxu0
    %v590 = vadd.f32 %v493, %v589
    %591 = vdwg.mxu0
    %v592 = vld [vmem:[%s9] sm:$0xff]
    %v593 = vld [vmem:[%s8] sm:$0xff]
    %594 = vmatpush.msra.mxu0 %v590
    %595 = vmatpush.msra.mxu0 %v588
    %596 = vmatpush.msra.mxu0 %v585
    %597 = vmatpush.msra.mxu0 %v583
    %598 = vmatpush.msra.mxu0 %v580
    %599 = vmatpush.msra.mxu0 %v578
    %600 = vmatpush.msra.mxu0 %v575
    %601 = vmatpush.msra.mxu0 %v573
    %602 = vmatpush.msra.mxu0 %v570
    %603 = vmatpush.msra.mxu0 %v568
    %604 = vmatpush.msra.mxu0 %v565
    %605 = vmatpush.msra.mxu0 %v563
    %606 = vmatpush.msra.mxu0 %v560
    %607 = vmatpush.msra.mxu0 %v558
    %608 = vmatpush.msra.mxu0 %v555
    %609 = vmatpush.msra.mxu0 %v553
    %610 = vmatmul.f32.gmra.mxu0 %v593
    %v611 = vpop.f32.mrf.mxu0
    %v612 = vadd.f32 0.0, %v611
    %613 = vdwg.mxu0
    %v614 = vadd.f32 %v592, %v612
    %615 = vst [vmem:[%s9] sm:$0xff] %v614
  $region45: #{gin_forward.5} parent=0 // pred_fallthru
    _
  // Predicated region
  $region46: #{gin_forward.5} parent=0 // pred_check
    _
  $region47: #{gin_forward.5} parent=0 // pred_check_branch
    %617 = sbr.rel (0) target = $region49
  $region48: #{gin_forward.5} parent=0 // pred_region
    _
  $region49: #{gin_forward.5} parent=0 // pred_fallthru
    _
  // Predicated region
  $region50: #{gin_forward.5} parent=0 // pred_check
    _
  $region51: #{gin_forward.5} parent=0 // pred_check_branch
    %619 = sbr.rel (0) target = $region53
  $region52: #{gin_forward.5} parent=0 // pred_region
    _
  $region53: #{gin_forward.5} parent=0 // pred_fallthru
    _

</llo_original>
